<compile_context>
chip_gen: v6e
topology: v6e:2x2x1
jax: 0.10.0
libtpu: 0.0.40
codegen_flags: <defaults>
</compile_context>

<pallas_src>
import jax
import jax.numpy as jnp
from jax.experimental import pallas as pl
from jax.experimental.pallas import tpu as pltpu

# ----------------------- configuration (small, deterministic) ---------------
N_NODES = 16      # number of graph nodes
N_INPUT = 4       # n_input
N_HIDDEN = 32     # n_hidden
K_CHEB = 8        # Chebyshev order K
B_GRAPHS = 8      # independent graphs; B*N = 128 -> lane-dense output


# ----------------------------- Pallas kernel --------------------------------
def kipfblock_kernel(lhat_t_ref, x_t_ref, w_t_ref, b_ref, o_ref):
    """Single grid step: all B graphs, all K orders, fused epilogue.

    lhat_t_ref: [B*N, B*N]  f32  block-diagonal L_hat^T over all graphs
    x_t_ref:    [F_in, B*N] f32  transposed, horizontally stacked features
    w_t_ref:    [K, H, F_in] f32 per-order transposed ChebConv weights
    b_ref:      [H, 1]      f32  bias column (lane-broadcast in epilogue)
    o_ref:      [H, B*N]    f32  transposed output (lane-dense, 128 lanes)
    """
    lhat_t = lhat_t_ref[...]          # [128, 128], kept resident in vregs
    x_t = x_t_ref[...]                # [4, 128] -> one vreg

    # T_0(L) x = x ; per-order projection accumulated directly (no scratch).
    tx_prev = x_t
    acc = jnp.dot(w_t_ref[0], tx_prev, preferred_element_type=jnp.float32)

    # T_1(L) x = L_hat x  ->  (T_1 x)^T = x^T @ L_hat^T : ONE matmul, all graphs.
    tx_cur = jnp.dot(x_t, lhat_t, preferred_element_type=jnp.float32)
    acc = acc + jnp.dot(w_t_ref[1], tx_cur, preferred_element_type=jnp.float32)

    # T_k = 2 L T_{k-1} - T_{k-2}  (static unroll; one matmul per order).
    # The *2.0 on the [4,128] result is one VPU op - cheaper than holding a
    # second [128,128] 2*L_hat^T resident.
    for k in range(2, K_CHEB):
        tx_next = (jnp.dot(tx_cur, lhat_t, preferred_element_type=jnp.float32)
                   * 2.0 - tx_prev)
        acc = acc + jnp.dot(w_t_ref[k], tx_next,
                            preferred_element_type=jnp.float32)
        tx_prev, tx_cur = tx_cur, tx_next

    # Bias + ReLU epilogue in f32 (v5e has no bf16 VPU); dropout = identity
    # in eval mode.  Store is a full, unmasked [32, 128] slab.
    o_ref[...] = jnp.maximum(acc + b_ref[...], 0.0)


# ------------------------------ JAX glue -------------------------------------
def build_scaled_laplacian(edge_index, num_nodes):
    """Dense L_hat = -D^{-1/2} A D^{-1/2} (ChebConv sym norm, lambda_max=2)."""
    row, col = edge_index[0], edge_index[1]
    keep = (row != col).astype(jnp.float32)   # ChebConv removes self loops
    adj = jnp.zeros((num_nodes, num_nodes), jnp.float32).at[row, col].add(keep)
    deg = adj.sum(axis=1)
    deg_inv_sqrt = jnp.where(deg > 0, 1.0 / jnp.sqrt(deg), 0.0)
    return -(deg_inv_sqrt[:, None] * adj * deg_inv_sqrt[None, :])


def init_params(key_w, key_b, n_input, n_hidden, k_cheb):
    """Deterministic glorot-uniform weights per Chebyshev order; nonzero bias."""
    limit = jnp.sqrt(6.0 / (n_input + n_hidden))
    w = jax.random.uniform(key_w, (k_cheb, n_input, n_hidden),
                           minval=-limit, maxval=limit, dtype=jnp.float32)
    # Nonzero bias so the bias-add / lane-broadcast path is actually tested.
    b = jax.random.uniform(key_b, (1, n_hidden), minval=-0.2, maxval=0.2,
                           dtype=jnp.float32)
    return w, b


def kipfblock_forward_batched(x, lhat, w, b):
    """Kipfblock forward for B independent graphs in ONE pallas_call / step.

    x:    [B, N, F_in] node features per graph
    lhat: [B, N, N]    scaled Laplacian per graph
    w:    [K, F_in, H] ChebConv weights (shared across graphs)
    b:    [1, H]       bias
    Returns [B, N, H].
    """
    B, N, F_in = x.shape
    K, _, H = w.shape
    BN = B * N

    # Block-diagonal transposed Laplacian over all graphs (wrapper-side prep:
    # makes every Chebyshev order a single matmul inside the kernel).
    lhat_t_bd = jnp.zeros((BN, BN), jnp.float32)
    for g in range(B):
        lhat_t_bd = lhat_t_bd.at[g * N:(g + 1) * N,
                                 g * N:(g + 1) * N].set(lhat[g].T)

    # Transposed stacked features [F_in, B*N]; per-order transposed weights;
    # bias as a column vector for lane-broadcast.
    x_t = jnp.transpose(x, (2, 0, 1)).reshape(F_in, BN)
    w_t = jnp.transpose(w, (0, 2, 1))          # [K, H, F_in]
    b_col = b.reshape(H, 1)

    out_t = pl.pallas_call(
        kipfblock_kernel,
        out_shape=jax.ShapeDtypeStruct((H, BN), jnp.float32),
        grid_spec=pltpu.PrefetchScalarGridSpec(
            num_scalar_prefetch=0,
            grid=(1,),                          # whole batch in one step
            in_specs=[
                pl.BlockSpec((BN, BN), lambda i: (0, 0)),
                pl.BlockSpec((F_in, BN), lambda i: (0, 0)),
                pl.BlockSpec((K, H, F_in), lambda i: (0, 0, 0)),
                pl.BlockSpec((H, 1), lambda i: (0, 0)),
            ],
            out_specs=pl.BlockSpec((H, BN), lambda i: (0, 0)),
        ),
        compiler_params=pltpu.CompilerParams(
            dimension_semantics=("arbitrary",)),
    )(lhat_t_bd, x_t, w_t, b_col)

    # Un-transpose the lane-dense slab: [H, B*N] -> [B, N, H] (layout only).
    return out_t.T.reshape(B, N, H)


# ------------------------------ reference ------------------------------------
def kipfblock_reference(x, lhat, w, b):
    """High-precision f32 reference for one graph: ReLU(sum_k T_k(L) x W_k + b)."""
    hp = jax.lax.Precision.HIGHEST
    tx_prev = x
    acc = jnp.dot(tx_prev, w[0], precision=hp)
    tx_cur = jnp.dot(lhat, x, precision=hp)
    acc = acc + jnp.dot(tx_cur, w[1], precision=hp)
    for k in range(2, K_CHEB):
        tx_next = 2.0 * jnp.dot(lhat, tx_cur, precision=hp) - tx_prev
        acc = acc + jnp.dot(tx_next, w[k], precision=hp)
        tx_prev, tx_cur = tx_cur, tx_next
    return jnp.maximum(acc + b, 0.0)


# -------------------------------- main ----------------------------------------
if __name__ == "__main__":
    key = jax.random.PRNGKey(0)
    k_x, k_w, k_b = jax.random.split(key, 3)

    # Node features for B independent graphs: [B, N, F_in]
    x = jax.random.normal(k_x, (B_GRAPHS, N_NODES, N_INPUT), dtype=jnp.float32)

    # Deterministic per-graph topology: undirected circulant ring with stride
    # (b % 7) + 1  (strides 1..7, no self loops, no duplicate edges).
    idx = jnp.arange(N_NODES, dtype=jnp.int32)
    lhats = []
    for bg in range(B_GRAPHS):
        stride = (bg % 7) + 1
        nxt = (idx + stride) % N_NODES
        ei = jnp.stack([jnp.concatenate([idx, nxt]),
                        jnp.concatenate([nxt, idx])], axis=0)   # [2, 2N]
        lhats.append(build_scaled_laplacian(ei, N_NODES))
    lhat = jnp.stack(lhats, axis=0)                             # [B, N, N]

    w, b = init_params(k_w, k_b, N_INPUT, N_HIDDEN, K_CHEB)

    out = jax.block_until_ready(kipfblock_forward_batched(x, lhat, w, b))
    ref = jnp.stack([kipfblock_reference(x[i], lhat[i], w, b)
                     for i in range(B_GRAPHS)])
    ref = jax.block_until_ready(ref)

    assert out.shape == (B_GRAPHS, N_NODES, N_HIDDEN), out.shape
    # f32 end-to-end (no bf16 operand casts) -> tolerance tightened 20x vs the
    # previous bf16-recursion version.
    max_err = float(jnp.max(jnp.abs(out - ref)))
    assert jnp.allclose(out, ref, atol=5e-3, rtol=5e-3), max_err
    print("KERNEL_OK")
</pallas_src>

<mosaic_0001>
module attributes {stable_mosaic.version = 11 : i64} {
  func.func @kipfblock_kernel(%arg0: i32, %arg1: memref<128x128xf32, #tpu.memory_space<vmem>>, %arg2: memref<4x128xf32, #tpu.memory_space<vmem>>, %arg3: memref<8x32x4xf32, #tpu.memory_space<vmem>>, %arg4: memref<32x1xf32, #tpu.memory_space<vmem>>, %arg5: memref<32x128xf32, #tpu.memory_space<vmem>>) attributes {dimension_semantics = [#tpu.dimension_semantics<arbitrary>], iteration_bounds = array<i64: 1>, scalar_prefetch = 0 : i64, scratch_operands = 0 : i64, tpu.core_type = #tpu.core_type<tc>, window_params = [{pipeline_mode = #tpu.pipeline_mode<synchronous>, transform_indices = @transform_0, window_bounds = array<i64: 128, 128>}, {pipeline_mode = #tpu.pipeline_mode<synchronous>, transform_indices = @transform_1, window_bounds = array<i64: 4, 128>}, {pipeline_mode = #tpu.pipeline_mode<synchronous>, transform_indices = @transform_2, window_bounds = array<i64: 8, 32, 4>}, {pipeline_mode = #tpu.pipeline_mode<synchronous>, transform_indices = @transform_3, window_bounds = array<i64: 32, 1>}, {pipeline_mode = #tpu.pipeline_mode<synchronous>, transform_indices = @transform_4, window_bounds = array<i64: 32, 128>}]} {
    %c0 = arith.constant 0 : index
    %c0_0 = arith.constant 0 : index
    %0 = vector.load %arg1[%c0, %c0_0] : memref<128x128xf32, #tpu.memory_space<vmem>>, vector<128x128xf32>
    %c0_1 = arith.constant 0 : index
    %c0_2 = arith.constant 0 : index
    %1 = vector.load %arg2[%c0_1, %c0_2] : memref<4x128xf32, #tpu.memory_space<vmem>>, vector<4x128xf32>
    %c0_3 = arith.constant 0 : index
    %c0_4 = arith.constant 0 : index
    %c0_5 = arith.constant 0 : index
    %2 = vector.load %arg3[%c0_3, %c0_4, %c0_5] : memref<8x32x4xf32, #tpu.memory_space<vmem>>, vector<1x32x4xf32>
    %3 = vector.shape_cast %2 : vector<1x32x4xf32> to vector<32x4xf32>
    %cst = arith.constant dense<0.000000e+00> : vector<32x128xf32>
    %4 = tpu.matmul %3, %1, %cst {dimension_numbers = #tpu.dot_dimension_numbers<[1], [0], [0], [1], [0, 0, 1, 1], [], []>} : vector<32x4xf32>, vector<4x128xf32>, vector<32x128xf32> -> vector<32x128xf32>
    %cst_6 = arith.constant dense<0.000000e+00> : vector<4x128xf32>
    %5 = tpu.matmul %1, %0, %cst_6 {dimension_numbers = #tpu.dot_dimension_numbers<[1], [0], [0], [1], [0, 0, 1, 1], [], []>} : vector<4x128xf32>, vector<128x128xf32>, vector<4x128xf32> -> vector<4x128xf32>
    %c1 = arith.constant 1 : index
    %c0_7 = arith.constant 0 : index
    %c0_8 = arith.constant 0 : index
    %6 = vector.load %arg3[%c1, %c0_7, %c0_8] : memref<8x32x4xf32, #tpu.memory_space<vmem>>, vector<1x32x4xf32>
    %7 = vector.shape_cast %6 : vector<1x32x4xf32> to vector<32x4xf32>
    %cst_9 = arith.constant dense<0.000000e+00> : vector<32x128xf32>
    %8 = tpu.matmul %7, %5, %cst_9 {dimension_numbers = #tpu.dot_dimension_numbers<[1], [0], [0], [1], [0, 0, 1, 1], [], []>} : vector<32x4xf32>, vector<4x128xf32>, vector<32x128xf32> -> vector<32x128xf32>
    %9 = arith.addf %4, %8 : vector<32x128xf32>
    %cst_10 = arith.constant dense<0.000000e+00> : vector<4x128xf32>
    %10 = tpu.matmul %5, %0, %cst_10 {dimension_numbers = #tpu.dot_dimension_numbers<[1], [0], [0], [1], [0, 0, 1, 1], [], []>} : vector<4x128xf32>, vector<128x128xf32>, vector<4x128xf32> -> vector<4x128xf32>
    %cst_11 = arith.constant 2.000000e+00 : f32
    %11 = vector.broadcast %cst_11 : f32 to vector<4x128xf32>
    %12 = arith.mulf %10, %11 : vector<4x128xf32>
    %13 = arith.subf %12, %1 : vector<4x128xf32>
    %c2 = arith.constant 2 : index
    %c0_12 = arith.constant 0 : index
    %c0_13 = arith.constant 0 : index
    %14 = vector.load %arg3[%c2, %c0_12, %c0_13] : memref<8x32x4xf32, #tpu.memory_space<vmem>>, vector<1x32x4xf32>
    %15 = vector.shape_cast %14 : vector<1x32x4xf32> to vector<32x4xf32>
    %cst_14 = arith.constant dense<0.000000e+00> : vector<32x128xf32>
    %16 = tpu.matmul %15, %13, %cst_14 {dimension_numbers = #tpu.dot_dimension_numbers<[1], [0], [0], [1], [0, 0, 1, 1], [], []>} : vector<32x4xf32>, vector<4x128xf32>, vector<32x128xf32> -> vector<32x128xf32>
    %17 = arith.addf %9, %16 : vector<32x128xf32>
    %cst_15 = arith.constant dense<0.000000e+00> : vector<4x128xf32>
    %18 = tpu.matmul %13, %0, %cst_15 {dimension_numbers = #tpu.dot_dimension_numbers<[1], [0], [0], [1], [0, 0, 1, 1], [], []>} : vector<4x128xf32>, vector<128x128xf32>, vector<4x128xf32> -> vector<4x128xf32>
    %cst_16 = arith.constant 2.000000e+00 : f32
    %19 = vector.broadcast %cst_16 : f32 to vector<4x128xf32>
    %20 = arith.mulf %18, %19 : vector<4x128xf32>
    %21 = arith.subf %20, %5 : vector<4x128xf32>
    %c3 = arith.constant 3 : index
    %c0_17 = arith.constant 0 : index
    %c0_18 = arith.constant 0 : index
    %22 = vector.load %arg3[%c3, %c0_17, %c0_18] : memref<8x32x4xf32, #tpu.memory_space<vmem>>, vector<1x32x4xf32>
    %23 = vector.shape_cast %22 : vector<1x32x4xf32> to vector<32x4xf32>
    %cst_19 = arith.constant dense<0.000000e+00> : vector<32x128xf32>
    %24 = tpu.matmul %23, %21, %cst_19 {dimension_numbers = #tpu.dot_dimension_numbers<[1], [0], [0], [1], [0, 0, 1, 1], [], []>} : vector<32x4xf32>, vector<4x128xf32>, vector<32x128xf32> -> vector<32x128xf32>
    %25 = arith.addf %17, %24 : vector<32x128xf32>
    %cst_20 = arith.constant dense<0.000000e+00> : vector<4x128xf32>
    %26 = tpu.matmul %21, %0, %cst_20 {dimension_numbers = #tpu.dot_dimension_numbers<[1], [0], [0], [1], [0, 0, 1, 1], [], []>} : vector<4x128xf32>, vector<128x128xf32>, vector<4x128xf32> -> vector<4x128xf32>
    %cst_21 = arith.constant 2.000000e+00 : f32
    %27 = vector.broadcast %cst_21 : f32 to vector<4x128xf32>
    %28 = arith.mulf %26, %27 : vector<4x128xf32>
    %29 = arith.subf %28, %13 : vector<4x128xf32>
    %c4 = arith.constant 4 : index
    %c0_22 = arith.constant 0 : index
    %c0_23 = arith.constant 0 : index
    %30 = vector.load %arg3[%c4, %c0_22, %c0_23] : memref<8x32x4xf32, #tpu.memory_space<vmem>>, vector<1x32x4xf32>
    %31 = vector.shape_cast %30 : vector<1x32x4xf32> to vector<32x4xf32>
    %cst_24 = arith.constant dense<0.000000e+00> : vector<32x128xf32>
    %32 = tpu.matmul %31, %29, %cst_24 {dimension_numbers = #tpu.dot_dimension_numbers<[1], [0], [0], [1], [0, 0, 1, 1], [], []>} : vector<32x4xf32>, vector<4x128xf32>, vector<32x128xf32> -> vector<32x128xf32>
    %33 = arith.addf %25, %32 : vector<32x128xf32>
    %cst_25 = arith.constant dense<0.000000e+00> : vector<4x128xf32>
    %34 = tpu.matmul %29, %0, %cst_25 {dimension_numbers = #tpu.dot_dimension_numbers<[1], [0], [0], [1], [0, 0, 1, 1], [], []>} : vector<4x128xf32>, vector<128x128xf32>, vector<4x128xf32> -> vector<4x128xf32>
    %cst_26 = arith.constant 2.000000e+00 : f32
    %35 = vector.broadcast %cst_26 : f32 to vector<4x128xf32>
    %36 = arith.mulf %34, %35 : vector<4x128xf32>
    %37 = arith.subf %36, %21 : vector<4x128xf32>
    %c5 = arith.constant 5 : index
    %c0_27 = arith.constant 0 : index
    %c0_28 = arith.constant 0 : index
    %38 = vector.load %arg3[%c5, %c0_27, %c0_28] : memref<8x32x4xf32, #tpu.memory_space<vmem>>, vector<1x32x4xf32>
    %39 = vector.shape_cast %38 : vector<1x32x4xf32> to vector<32x4xf32>
    %cst_29 = arith.constant dense<0.000000e+00> : vector<32x128xf32>
    %40 = tpu.matmul %39, %37, %cst_29 {dimension_numbers = #tpu.dot_dimension_numbers<[1], [0], [0], [1], [0, 0, 1, 1], [], []>} : vector<32x4xf32>, vector<4x128xf32>, vector<32x128xf32> -> vector<32x128xf32>
    %41 = arith.addf %33, %40 : vector<32x128xf32>
    %cst_30 = arith.constant dense<0.000000e+00> : vector<4x128xf32>
    %42 = tpu.matmul %37, %0, %cst_30 {dimension_numbers = #tpu.dot_dimension_numbers<[1], [0], [0], [1], [0, 0, 1, 1], [], []>} : vector<4x128xf32>, vector<128x128xf32>, vector<4x128xf32> -> vector<4x128xf32>
    %cst_31 = arith.constant 2.000000e+00 : f32
    %43 = vector.broadcast %cst_31 : f32 to vector<4x128xf32>
    %44 = arith.mulf %42, %43 : vector<4x128xf32>
    %45 = arith.subf %44, %29 : vector<4x128xf32>
    %c6 = arith.constant 6 : index
    %c0_32 = arith.constant 0 : index
    %c0_33 = arith.constant 0 : index
    %46 = vector.load %arg3[%c6, %c0_32, %c0_33] : memref<8x32x4xf32, #tpu.memory_space<vmem>>, vector<1x32x4xf32>
    %47 = vector.shape_cast %46 : vector<1x32x4xf32> to vector<32x4xf32>
    %cst_34 = arith.constant dense<0.000000e+00> : vector<32x128xf32>
    %48 = tpu.matmul %47, %45, %cst_34 {dimension_numbers = #tpu.dot_dimension_numbers<[1], [0], [0], [1], [0, 0, 1, 1], [], []>} : vector<32x4xf32>, vector<4x128xf32>, vector<32x128xf32> -> vector<32x128xf32>
    %49 = arith.addf %41, %48 : vector<32x128xf32>
    %cst_35 = arith.constant dense<0.000000e+00> : vector<4x128xf32>
    %50 = tpu.matmul %45, %0, %cst_35 {dimension_numbers = #tpu.dot_dimension_numbers<[1], [0], [0], [1], [0, 0, 1, 1], [], []>} : vector<4x128xf32>, vector<128x128xf32>, vector<4x128xf32> -> vector<4x128xf32>
    %cst_36 = arith.constant 2.000000e+00 : f32
    %51 = vector.broadcast %cst_36 : f32 to vector<4x128xf32>
    %52 = arith.mulf %50, %51 : vector<4x128xf32>
    %53 = arith.subf %52, %37 : vector<4x128xf32>
    %c7 = arith.constant 7 : index
    %c0_37 = arith.constant 0 : index
    %c0_38 = arith.constant 0 : index
    %54 = vector.load %arg3[%c7, %c0_37, %c0_38] : memref<8x32x4xf32, #tpu.memory_space<vmem>>, vector<1x32x4xf32>
    %55 = vector.shape_cast %54 : vector<1x32x4xf32> to vector<32x4xf32>
    %cst_39 = arith.constant dense<0.000000e+00> : vector<32x128xf32>
    %56 = tpu.matmul %55, %53, %cst_39 {dimension_numbers = #tpu.dot_dimension_numbers<[1], [0], [0], [1], [0, 0, 1, 1], [], []>} : vector<32x4xf32>, vector<4x128xf32>, vector<32x128xf32> -> vector<32x128xf32>
    %57 = arith.addf %49, %56 : vector<32x128xf32>
    %c0_40 = arith.constant 0 : index
    %c0_41 = arith.constant 0 : index
    %58 = vector.load %arg4[%c0_40, %c0_41] : memref<32x1xf32, #tpu.memory_space<vmem>>, vector<32x1xf32>
    %59 = vector.broadcast %58 : vector<32x1xf32> to vector<32x128xf32>
    %60 = arith.addf %57, %59 : vector<32x128xf32>
    %cst_42 = arith.constant 0.000000e+00 : f32
    %61 = vector.broadcast %cst_42 : f32 to vector<32x128xf32>
    %62 = arith.maximumf %60, %61 : vector<32x128xf32>
    %c0_43 = arith.constant 0 : index
    %c0_44 = arith.constant 0 : index
    %63 = vector.load %arg5[%c0_43, %c0_44] : memref<32x128xf32, #tpu.memory_space<vmem>>, vector<32x128xf32>
    tpu.vector_store %arg5[%c0_43, %c0_44], %62 {strides = array<i32>} : memref<32x128xf32, #tpu.memory_space<vmem>>, vector<32x128xf32>,
    return
  }
  func.func @transform_0(%arg0: i32) -> (i32, i32) {
    %c0_i32 = arith.constant 0 : i32
    %c0_i32_0 = arith.constant 0 : i32
    %c0_i32_1 = arith.constant 0 : i32
    return %c0_i32, %c0_i32_0 : i32, i32
  }
  func.func @transform_1(%arg0: i32) -> (i32, i32) {
    %c0_i32 = arith.constant 0 : i32
    %c0_i32_0 = arith.constant 0 : i32
    %c0_i32_1 = arith.constant 0 : i32
    return %c0_i32, %c0_i32_0 : i32, i32
  }
  func.func @transform_2(%arg0: i32) -> (i32, i32, i32) {
    %c0_i32 = arith.constant 0 : i32
    %c0_i32_0 = arith.constant 0 : i32
    %c0_i32_1 = arith.constant 0 : i32
    %c0_i32_2 = arith.constant 0 : i32
    return %c0_i32, %c0_i32_0, %c0_i32_1 : i32, i32, i32
  }
  func.func @transform_3(%arg0: i32) -> (i32, i32) {
    %c0_i32 = arith.constant 0 : i32
    %c0_i32_0 = arith.constant 0 : i32
    %c0_i32_1 = arith.constant 0 : i32
    return %c0_i32, %c0_i32_0 : i32, i32
  }
  func.func @transform_4(%arg0: i32) -> (i32, i32) {
    %c0_i32 = arith.constant 0 : i32
    %c0_i32_0 = arith.constant 0 : i32
    %c0_i32_1 = arith.constant 0 : i32
    return %c0_i32, %c0_i32_0 : i32, i32
  }
}

</mosaic_0001>

<llo_original>
// kernel: tpu_custom_call.1
$region0: #{tpu_custom_call.1}
  #allocation0 [shape = 'u32[]', space=smem, size = 0x4, offset = 0x4, fixed_abs, tag = 'smem constant byte address 0x4 - core index']
  #allocation1 [shape = 'u32[144,128]{1,0:T(1,128)}', space=vmem, size = 0x12000, scoped, tag = 'internal scratch']
  %s0 = inlined_call_operand.vmem [shape: f32[128,128], index: 0, kind: input, shape index: {}]
  %s1 = inlined_call_operand.vmem [shape: f32[4,128], index: 1, kind: input, shape index: {}]
  %s2 = inlined_call_operand.vmem [shape: f32[8,32,4], index: 2, kind: input, shape index: {}]
  %s3 = inlined_call_operand.vmem [shape: f32[32,1], index: 3, kind: input, shape index: {}]
  %s4 = inlined_call_operand.hbm [shape: f32[32,128], index: 4, kind: output, shape index: {}]
  %s5 = sld [smem:[#allocation0]]
  $region26: #{tpu_custom_call.1} parent=0
    _
  %s7 = ssub.s32 1, %s5
  %s8 = scalar_select 0, %s7, %s5
  $region1: #{tpu_custom_call.1} parent=0
    #allocation2 [shape = 'u8[16384]{0}', space=vmem, size = 0x4000, scoped, tag = 'output window, operand 0, single buffered']
    #allocation3 [shape = 's32[1]{0}', space=sflag, size = 0x4, scoped, tag = 'scoped memory for tpu_custom_call.1']
    %9 = vsyncpa [#allocation3], 0
    // Predicated region
    $region2: #{tpu_custom_call.1} parent=1 // pred_check
      _
    $region3: #{tpu_custom_call.1} parent=1 // pred_check_branch
      %11 = sbr.rel (0) target = $region5
    $region4: #{tpu_custom_call.1} parent=1 // pred_region
      _
    $region5: #{tpu_custom_call.1} parent=1 // pred_fallthru
      _
    // Predicated region
    $region6: #{tpu_custom_call.1} parent=1 // pred_check
      _
    $region7: #{tpu_custom_call.1} parent=1 // pred_check_branch
      %13 = sbr.rel (0) target = $region9
    $region8: #{tpu_custom_call.1} parent=1 // pred_region
      _
    $region9: #{tpu_custom_call.1} parent=1 // pred_fallthru
      _
    // Predicated region
    $region10: #{tpu_custom_call.1} parent=1 // pred_check
      _
    $region11: #{tpu_custom_call.1} parent=1 // pred_check_branch
      %15 = sbr.rel (0) target = $region13
    $region12: #{tpu_custom_call.1} parent=1 // pred_region
      _
    $region13: #{tpu_custom_call.1} parent=1 // pred_fallthru
      _
    // Predicated region
    $region14: #{tpu_custom_call.1} parent=1 // pred_check
      _
    $region15: #{tpu_custom_call.1} parent=1 // pred_check_branch
      %17 = sbr.rel (0) target = $region17
    $region16: #{tpu_custom_call.1} parent=1 // pred_region
      _
    $region17: #{tpu_custom_call.1} parent=1 // pred_fallthru
      _
    %v18 = vld [vmem:[%s0] sm:$0xff]
    %v19 = vld [vmem:[%s0 + $0x8] sm:$0xff]
    %v20 = vld [vmem:[%s0 + $0x10] sm:$0xff]
    %v21 = vld [vmem:[%s0 + $0x18] sm:$0xff]
    %v22 = vld [vmem:[%s0 + $0x20] sm:$0xff]
    %v23 = vld [vmem:[%s0 + $0x28] sm:$0xff]
    %v24 = vld [vmem:[%s0 + $0x30] sm:$0xff]
    %v25 = vld [vmem:[%s0 + $0x38] sm:$0xff]
    %v26 = vld [vmem:[%s0 + $0x40] sm:$0xff]
    %v27 = vld [vmem:[%s0 + $0x48] sm:$0xff]
    %v28 = vld [vmem:[%s0 + $0x50] sm:$0xff]
    %v29 = vld [vmem:[%s0 + $0x58] sm:$0xff]
    %v30 = vld [vmem:[%s0 + $0x60] sm:$0xff]
    %v31 = vld [vmem:[%s0 + $0x68] sm:$0xff]
    %v32 = vld [vmem:[%s0 + $0x70] sm:$0xff]
    %v33 = vld [vmem:[%s0 + $0x78] sm:$0xff]
    %v34 = vld [vmem:[%s1] sm:$0xf]
    %v35 = vld [vmem:[%s2] sm:$0xff]
    %v36 = vld [vmem:[%s2 + $0x8] sm:$0xff]
    %v37 = vld [vmem:[%s2 + $0x10] sm:$0xff]
    %v38 = vld [vmem:[%s2 + $0x18] sm:$0xff]
    %39 = vmatprep.subr.mxu0 0.0
    %40 = vmatpush1.msra.mxu0 %v33
    %41 = vmatprep.subr.mxu0 0.0
    %42 = vmatpush1.msra.mxu0 %v32
    %43 = vmatprep.subr.mxu0 0.0
    %44 = vmatpush1.msra.mxu0 %v31
    %45 = vmatprep.subr.mxu0 0.0
    %46 = vmatpush1.msra.mxu0 %v30
    %47 = vmatprep.subr.mxu0 0.0
    %48 = vmatpush1.msra.mxu0 %v29
    %49 = vmatprep.subr.mxu0 0.0
    %50 = vmatpush1.msra.mxu0 %v28
    %51 = vmatprep.subr.mxu0 0.0
    %52 = vmatpush1.msra.mxu0 %v27
    %53 = vmatprep.subr.mxu0 0.0
    %54 = vmatpush1.msra.mxu0 %v26
    %55 = vmatprep.subr.mxu0 0.0
    %56 = vmatpush1.msra.mxu0 %v25
    %57 = vmatprep.subr.mxu0 0.0
    %58 = vmatpush1.msra.mxu0 %v24
    %59 = vmatprep.subr.mxu0 0.0
    %60 = vmatpush1.msra.mxu0 %v23
    %61 = vmatprep.subr.mxu0 0.0
    %62 = vmatpush1.msra.mxu0 %v22
    %63 = vmatprep.subr.mxu0 0.0
    %64 = vmatpush1.msra.mxu0 %v21
    %65 = vmatprep.subr.mxu0 0.0
    %66 = vmatpush1.msra.mxu0 %v20
    %67 = vmatprep.subr.mxu0 0.0
    %68 = vmatpush1.msra.mxu0 %v19
    %69 = vmatprep.subr.mxu0 0.0
    %70 = vmatpush1.msra.mxu0 %v18
    %71 = vmatprep.subr.mxu0 0.0
    %72 = vmatpush2.msra.mxu0 0.0
    %73 = vmatprep.subr.mxu0 0.0
    %74 = vmatpush2.msra.mxu0 0.0
    %75 = vmatprep.subr.mxu0 0.0
    %76 = vmatpush2.msra.mxu0 0.0
    %77 = vmatprep.subr.mxu0 0.0
    %78 = vmatpush2.msra.mxu0 0.0
    %79 = vmatprep.subr.mxu0 0.0
    %80 = vmatpush2.msra.mxu0 0.0
    %81 = vmatprep.subr.mxu0 0.0
    %82 = vmatpush2.msra.mxu0 0.0
    %83 = vmatprep.subr.mxu0 0.0
    %84 = vmatpush2.msra.mxu0 0.0
    %85 = vmatprep.subr.mxu0 0.0
    %86 = vmatpush2.msra.mxu0 0.0
    %87 = vmatprep.subr.mxu0 0.0
    %88 = vmatpush2.msra.mxu0 0.0
    %89 = vmatprep.subr.mxu0 0.0
    %90 = vmatpush2.msra.mxu0 0.0
    %91 = vmatprep.subr.mxu0 0.0
    %92 = vmatpush2.msra.mxu0 0.0
    %93 = vmatprep.subr.mxu0 0.0
    %94 = vmatpush2.msra.mxu0 0.0
    %95 = vmatprep.subr.mxu0 0.0
    %96 = vmatpush2.msra.mxu0 0.0
    %97 = vmatprep.subr.mxu0 0.0
    %98 = vmatpush2.msra.mxu0 0.0
    %99 = vmatprep.subr.mxu0 0.0
    %100 = vmatpush2.msra.mxu0 0.0
    %101 = vmatprep.subr.mxu0 0.0
    %102 = vmatpush2.msra.mxu0 0.0
    %103 = vmatprep.mubr.f32.mxu0 0.0
    %104 = vmatmul.mubr.f32.gmra.mxu0 %v34
    %v105 = vpop.f32.mrf.mxu0
    %v106 = vadd.f32 0.0, %v105
    %v107 = vpop.f32.mrf.mxu0
    %108 = vdwg.mxu0
    %s109 = scalar_lea.vmem %s2, 32
    %v110 = vld [vmem:[%s109] sm:$0xff]
    %v111 = vld [vmem:[%s109 + $0x8] sm:$0xff]
    %v112 = vld [vmem:[%s109 + $0x10] sm:$0xff]
    %v113 = vld [vmem:[%s109 + $0x18] sm:$0xff]
    %vm114 = vcmask 31744
    %v116 = vsel %vm114, %v110, 0
    %v119 = vsel %vm114, %v111, 0
    %v122 = vsel %vm114, %v112, 0
    %v125 = vsel %vm114, %v113, 0
    %vm127 = vcmask 1043456
    %v129 = vsel %vm127, %v106, 0
    %131 = vmatprep.subr.mxu0 0.0
    %132 = vmatpush1.msra.mxu0 0.0
    %133 = vmatprep.subr.mxu0 0.0
    %134 = vmatpush1.msra.mxu0 0.0
    %135 = vmatprep.subr.mxu0 0.0
    %136 = vmatpush1.msra.mxu0 0.0
    %137 = vmatprep.subr.mxu0 0.0
    %138 = vmatpush1.msra.mxu0 0.0
    %139 = vmatprep.subr.mxu0 0.0
    %140 = vmatpush1.msra.mxu0 0.0
    %141 = vmatprep.subr.mxu0 0.0
    %142 = vmatpush1.msra.mxu0 0.0
    %143 = vmatprep.subr.mxu0 0.0
    %144 = vmatpush1.msra.mxu0 0.0
    %145 = vmatprep.subr.mxu0 0.0
    %146 = vmatpush1.msra.mxu0 0.0
    %147 = vmatprep.subr.mxu0 0.0
    %148 = vmatpush1.msra.mxu0 0.0
    %149 = vmatprep.subr.mxu0 0.0
    %150 = vmatpush1.msra.mxu0 0.0
    %151 = vmatprep.subr.mxu0 0.0
    %152 = vmatpush1.msra.mxu0 0.0
    %153 = vmatprep.subr.mxu0 0.0
    %154 = vmatpush1.msra.mxu0 0.0
    %155 = vmatprep.subr.mxu0 0.0
    %156 = vmatpush1.msra.mxu0 0.0
    %157 = vmatprep.subr.mxu0 0.0
    %158 = vmatpush1.msra.mxu0 0.0
    %159 = vmatprep.subr.mxu0 0.0
    %160 = vmatpush1.msra.mxu0 0.0
    %161 = vmatprep.subr.mxu0 0.0
    %162 = vmatpush1.msra.mxu0 %v129
    %163 = vmatprep.subr.mxu0 0.0
    %164 = vmatpush2.msra.mxu0 0.0
    %165 = vmatprep.subr.mxu0 0.0
    %166 = vmatpush2.msra.mxu0 0.0
    %167 = vmatprep.subr.mxu0 0.0
    %168 = vmatpush2.msra.mxu0 0.0
    %169 = vmatprep.subr.mxu0 0.0
    %170 = vmatpush2.msra.mxu0 0.0
    %171 = vmatprep.subr.mxu0 0.0
    %172 = vmatpush2.msra.mxu0 0.0
    %173 = vmatprep.subr.mxu0 0.0
    %174 = vmatpush2.msra.mxu0 0.0
    %175 = vmatprep.subr.mxu0 0.0
    %176 = vmatpush2.msra.mxu0 0.0
    %177 = vmatprep.subr.mxu0 0.0
    %178 = vmatpush2.msra.mxu0 0.0
    %179 = vmatprep.subr.mxu0 0.0
    %180 = vmatpush2.msra.mxu0 0.0
    %181 = vmatprep.subr.mxu0 0.0
    %182 = vmatpush2.msra.mxu0 0.0
    %183 = vmatprep.subr.mxu0 0.0
    %184 = vmatpush2.msra.mxu0 0.0
    %185 = vmatprep.subr.mxu0 0.0
    %186 = vmatpush2.msra.mxu0 0.0
    %187 = vmatprep.subr.mxu0 0.0
    %188 = vmatpush2.msra.mxu0 0.0
    %189 = vmatprep.subr.mxu0 0.0
    %190 = vmatpush2.msra.mxu0 0.0
    %191 = vmatprep.subr.mxu0 0.0
    %192 = vmatpush2.msra.mxu0 0.0
    %193 = vmatprep.subr.mxu0 0.0
    %194 = vmatpush2.msra.mxu0 0.0
    %195 = vmatprep.mubr.f32.mxu0 0.0
    %196 = vmatmul.mubr.f32.gmra.mxu0 %v116
    %v197 = vpop.f32.mrf.mxu0
    %v198 = vadd.f32 0.0, %v197
    %v199 = vpop.f32.mrf.mxu0
    %200 = vmatprep.mubr.f32.mxu0 0.0
    %201 = vmatmul.mubr.f32.gmra.mxu0 %v119
    %v202 = vpop.f32.mrf.mxu0
    %v203 = vadd.f32 0.0, %v202
    %v204 = vpop.f32.mrf.mxu0
    %205 = vmatprep.mubr.f32.mxu0 0.0
    %206 = vmatmul.mubr.f32.gmra.mxu0 %v122
    %v207 = vpop.f32.mrf.mxu0
    %v208 = vadd.f32 0.0, %v207
    %v209 = vpop.f32.mrf.mxu0
    %210 = vmatprep.mubr.f32.mxu0 0.0
    %211 = vmatmul.mubr.f32.gmra.mxu0 %v125
    %v212 = vpop.f32.mrf.mxu0
    %v213 = vadd.f32 0.0, %v212
    %v214 = vpop.f32.mrf.mxu0
    %215 = vdwg.mxu0
    %v217 = vsel %vm114, %v35, 0
    %v220 = vsel %vm114, %v36, 0
    %v223 = vsel %vm114, %v37, 0
    %v226 = vsel %vm114, %v38, 0
    %v229 = vsel %vm127, %v34, 0
    %231 = vmatprep.subr.mxu0 0.0
    %232 = vmatpush1.msra.mxu0 0.0
    %233 = vmatprep.subr.mxu0 0.0
    %234 = vmatpush1.msra.mxu0 0.0
    %235 = vmatprep.subr.mxu0 0.0
    %236 = vmatpush1.msra.mxu0 0.0
    %237 = vmatprep.subr.mxu0 0.0
    %238 = vmatpush1.msra.mxu0 0.0
    %239 = vmatprep.subr.mxu0 0.0
    %240 = vmatpush1.msra.mxu0 0.0
    %241 = vmatprep.subr.mxu0 0.0
    %242 = vmatpush1.msra.mxu0 0.0
    %243 = vmatprep.subr.mxu0 0.0
    %244 = vmatpush1.msra.mxu0 0.0
    %245 = vmatprep.subr.mxu0 0.0
    %246 = vmatpush1.msra.mxu0 0.0
    %247 = vmatprep.subr.mxu0 0.0
    %248 = vmatpush1.msra.mxu0 0.0
    %249 = vmatprep.subr.mxu0 0.0
    %250 = vmatpush1.msra.mxu0 0.0
    %251 = vmatprep.subr.mxu0 0.0
    %252 = vmatpush1.msra.mxu0 0.0
    %253 = vmatprep.subr.mxu0 0.0
    %254 = vmatpush1.msra.mxu0 0.0
    %255 = vmatprep.subr.mxu0 0.0
    %256 = vmatpush1.msra.mxu0 0.0
    %257 = vmatprep.subr.mxu0 0.0
    %258 = vmatpush1.msra.mxu0 0.0
    %259 = vmatprep.subr.mxu0 0.0
    %260 = vmatpush1.msra.mxu0 0.0
    %261 = vmatprep.subr.mxu0 0.0
    %262 = vmatpush1.msra.mxu0 %v229
    %263 = vmatprep.subr.mxu0 0.0
    %264 = vmatpush2.msra.mxu0 0.0
    %265 = vmatprep.subr.mxu0 0.0
    %266 = vmatpush2.msra.mxu0 0.0
    %267 = vmatprep.subr.mxu0 0.0
    %268 = vmatpush2.msra.mxu0 0.0
    %269 = vmatprep.subr.mxu0 0.0
    %270 = vmatpush2.msra.mxu0 0.0
    %271 = vmatprep.subr.mxu0 0.0
    %272 = vmatpush2.msra.mxu0 0.0
    %273 = vmatprep.subr.mxu0 0.0
    %274 = vmatpush2.msra.mxu0 0.0
    %275 = vmatprep.subr.mxu0 0.0
    %276 = vmatpush2.msra.mxu0 0.0
    %277 = vmatprep.subr.mxu0 0.0
    %278 = vmatpush2.msra.mxu0 0.0
    %279 = vmatprep.subr.mxu0 0.0
    %280 = vmatpush2.msra.mxu0 0.0
    %281 = vmatprep.subr.mxu0 0.0
    %282 = vmatpush2.msra.mxu0 0.0
    %283 = vmatprep.subr.mxu0 0.0
    %284 = vmatpush2.msra.mxu0 0.0
    %285 = vmatprep.subr.mxu0 0.0
    %286 = vmatpush2.msra.mxu0 0.0
    %287 = vmatprep.subr.mxu0 0.0
    %288 = vmatpush2.msra.mxu0 0.0
    %289 = vmatprep.subr.mxu0 0.0
    %290 = vmatpush2.msra.mxu0 0.0
    %291 = vmatprep.subr.mxu0 0.0
    %292 = vmatpush2.msra.mxu0 0.0
    %293 = vmatprep.subr.mxu0 0.0
    %294 = vmatpush2.msra.mxu0 0.0
    %295 = vmatprep.mubr.f32.mxu0 0.0
    %296 = vmatmul.mubr.f32.gmra.mxu0 %v217
    %v297 = vpop.f32.mrf.mxu0
    %v298 = vadd.f32 %v198, %v297
    %v299 = vpop.f32.mrf.mxu0
    %300 = vmatprep.mubr.f32.mxu0 0.0
    %301 = vmatmul.mubr.f32.gmra.mxu0 %v220
    %v302 = vpop.f32.mrf.mxu0
    %v303 = vadd.f32 %v203, %v302
    %v304 = vpop.f32.mrf.mxu0
    %305 = vmatprep.mubr.f32.mxu0 0.0
    %306 = vmatmul.mubr.f32.gmra.mxu0 %v223
    %v307 = vpop.f32.mrf.mxu0
    %v308 = vadd.f32 %v208, %v307
    %v309 = vpop.f32.mrf.mxu0
    %310 = vmatprep.mubr.f32.mxu0 0.0
    %311 = vmatmul.mubr.f32.gmra.mxu0 %v226
    %v312 = vpop.f32.mrf.mxu0
    %v313 = vadd.f32 %v213, %v312
    %v314 = vpop.f32.mrf.mxu0
    %315 = vdwg.mxu0
    %316 = vmatprep.subr.mxu0 0.0
    %317 = vmatpush1.msra.mxu0 %v33
    %318 = vmatprep.subr.mxu0 0.0
    %319 = vmatpush1.msra.mxu0 %v32
    %320 = vmatprep.subr.mxu0 0.0
    %321 = vmatpush1.msra.mxu0 %v31
    %322 = vmatprep.subr.mxu0 0.0
    %323 = vmatpush1.msra.mxu0 %v30
    %324 = vmatprep.subr.mxu0 0.0
    %325 = vmatpush1.msra.mxu0 %v29
    %326 = vmatprep.subr.mxu0 0.0
    %327 = vmatpush1.msra.mxu0 %v28
    %328 = vmatprep.subr.mxu0 0.0
    %329 = vmatpush1.msra.mxu0 %v27
    %330 = vmatprep.subr.mxu0 0.0
    %331 = vmatpush1.msra.mxu0 %v26
    %332 = vmatprep.subr.mxu0 0.0
    %333 = vmatpush1.msra.mxu0 %v25
    %334 = vmatprep.subr.mxu0 0.0
    %335 = vmatpush1.msra.mxu0 %v24
    %336 = vmatprep.subr.mxu0 0.0
    %337 = vmatpush1.msra.mxu0 %v23
    %338 = vmatprep.subr.mxu0 0.0
    %339 = vmatpush1.msra.mxu0 %v22
    %340 = vmatprep.subr.mxu0 0.0
    %341 = vmatpush1.msra.mxu0 %v21
    %342 = vmatprep.subr.mxu0 0.0
    %343 = vmatpush1.msra.mxu0 %v20
    %344 = vmatprep.subr.mxu0 0.0
    %345 = vmatpush1.msra.mxu0 %v19
    %346 = vmatprep.subr.mxu0 0.0
    %347 = vmatpush1.msra.mxu0 %v18
    %348 = vmatprep.subr.mxu0 0.0
    %349 = vmatpush2.msra.mxu0 0.0
    %350 = vmatprep.subr.mxu0 0.0
    %351 = vmatpush2.msra.mxu0 0.0
    %352 = vmatprep.subr.mxu0 0.0
    %353 = vmatpush2.msra.mxu0 0.0
    %354 = vmatprep.subr.mxu0 0.0
    %355 = vmatpush2.msra.mxu0 0.0
    %356 = vmatprep.subr.mxu0 0.0
    %357 = vmatpush2.msra.mxu0 0.0
    %358 = vmatprep.subr.mxu0 0.0
    %359 = vmatpush2.msra.mxu0 0.0
    %360 = vmatprep.subr.mxu0 0.0
    %361 = vmatpush2.msra.mxu0 0.0
    %362 = vmatprep.subr.mxu0 0.0
    %363 = vmatpush2.msra.mxu0 0.0
    %364 = vmatprep.subr.mxu0 0.0
    %365 = vmatpush2.msra.mxu0 0.0
    %366 = vmatprep.subr.mxu0 0.0
    %367 = vmatpush2.msra.mxu0 0.0
    %368 = vmatprep.subr.mxu0 0.0
    %369 = vmatpush2.msra.mxu0 0.0
    %370 = vmatprep.subr.mxu0 0.0
    %371 = vmatpush2.msra.mxu0 0.0
    %372 = vmatprep.subr.mxu0 0.0
    %373 = vmatpush2.msra.mxu0 0.0
    %374 = vmatprep.subr.mxu0 0.0
    %375 = vmatpush2.msra.mxu0 0.0
    %376 = vmatprep.subr.mxu0 0.0
    %377 = vmatpush2.msra.mxu0 0.0
    %378 = vmatprep.subr.mxu0 0.0
    %379 = vmatpush2.msra.mxu0 0.0
    %380 = vmatprep.mubr.f32.mxu0 0.0
    %381 = vmatmul.mubr.f32.gmra.mxu0 %v106
    %v382 = vpop.f32.mrf.mxu0
    %v383 = vadd.f32 0.0, %v382
    %v384 = vpop.f32.mrf.mxu0
    %385 = vdwg.mxu0
    %v386 = vmul.f32 %v383, 2.0
    %v387 = vsub.f32 %v386, %v34
    %s388 = scalar_lea.vmem %s2, 64
    %v389 = vld [vmem:[%s388] sm:$0xff]
    %v390 = vld [vmem:[%s388 + $0x8] sm:$0xff]
    %v391 = vld [vmem:[%s388 + $0x10] sm:$0xff]
    %v392 = vld [vmem:[%s388 + $0x18] sm:$0xff]
    %v394 = vsel %vm114, %v389, 0
    %v397 = vsel %vm114, %v390, 0
    %v400 = vsel %vm114, %v391, 0
    %v403 = vsel %vm114, %v392, 0
    %v406 = vsel %vm127, %v387, 0
    %408 = vmatprep.subr.mxu0 0.0
    %409 = vmatpush1.msra.mxu0 0.0
    %410 = vmatprep.subr.mxu0 0.0
    %411 = vmatpush1.msra.mxu0 0.0
    %412 = vmatprep.subr.mxu0 0.0
    %413 = vmatpush1.msra.mxu0 0.0
    %414 = vmatprep.subr.mxu0 0.0
    %415 = vmatpush1.msra.mxu0 0.0
    %416 = vmatprep.subr.mxu0 0.0
    %417 = vmatpush1.msra.mxu0 0.0
    %418 = vmatprep.subr.mxu0 0.0
    %419 = vmatpush1.msra.mxu0 0.0
    %420 = vmatprep.subr.mxu0 0.0
    %421 = vmatpush1.msra.mxu0 0.0
    %422 = vmatprep.subr.mxu0 0.0
    %423 = vmatpush1.msra.mxu0 0.0
    %424 = vmatprep.subr.mxu0 0.0
    %425 = vmatpush1.msra.mxu0 0.0
    %426 = vmatprep.subr.mxu0 0.0
    %427 = vmatpush1.msra.mxu0 0.0
    %428 = vmatprep.subr.mxu0 0.0
    %429 = vmatpush1.msra.mxu0 0.0
    %430 = vmatprep.subr.mxu0 0.0
    %431 = vmatpush1.msra.mxu0 0.0
    %432 = vmatprep.subr.mxu0 0.0
    %433 = vmatpush1.msra.mxu0 0.0
    %434 = vmatprep.subr.mxu0 0.0
    %435 = vmatpush1.msra.mxu0 0.0
    %436 = vmatprep.subr.mxu0 0.0
    %437 = vmatpush1.msra.mxu0 0.0
    %438 = vmatprep.subr.mxu0 0.0
    %439 = vmatpush1.msra.mxu0 %v406
    %440 = vmatprep.subr.mxu0 0.0
    %441 = vmatpush2.msra.mxu0 0.0
    %442 = vmatprep.subr.mxu0 0.0
    %443 = vmatpush2.msra.mxu0 0.0
    %444 = vmatprep.subr.mxu0 0.0
    %445 = vmatpush2.msra.mxu0 0.0
    %446 = vmatprep.subr.mxu0 0.0
    %447 = vmatpush2.msra.mxu0 0.0
    %448 = vmatprep.subr.mxu0 0.0
    %449 = vmatpush2.msra.mxu0 0.0
    %450 = vmatprep.subr.mxu0 0.0
    %451 = vmatpush2.msra.mxu0 0.0
    %452 = vmatprep.subr.mxu0 0.0
    %453 = vmatpush2.msra.mxu0 0.0
    %454 = vmatprep.subr.mxu0 0.0
    %455 = vmatpush2.msra.mxu0 0.0
    %456 = vmatprep.subr.mxu0 0.0
    %457 = vmatpush2.msra.mxu0 0.0
    %458 = vmatprep.subr.mxu0 0.0
    %459 = vmatpush2.msra.mxu0 0.0
    %460 = vmatprep.subr.mxu0 0.0
    %461 = vmatpush2.msra.mxu0 0.0
    %462 = vmatprep.subr.mxu0 0.0
    %463 = vmatpush2.msra.mxu0 0.0
    %464 = vmatprep.subr.mxu0 0.0
    %465 = vmatpush2.msra.mxu0 0.0
    %466 = vmatprep.subr.mxu0 0.0
    %467 = vmatpush2.msra.mxu0 0.0
    %468 = vmatprep.subr.mxu0 0.0
    %469 = vmatpush2.msra.mxu0 0.0
    %470 = vmatprep.subr.mxu0 0.0
    %471 = vmatpush2.msra.mxu0 0.0
    %472 = vmatprep.mubr.f32.mxu0 0.0
    %473 = vmatmul.mubr.f32.gmra.mxu0 %v394
    %v474 = vpop.f32.mrf.mxu0
    %v475 = vadd.f32 0.0, %v474
    %v476 = vpop.f32.mrf.mxu0
    %477 = vmatprep.mubr.f32.mxu0 0.0
    %478 = vmatmul.mubr.f32.gmra.mxu0 %v397
    %v479 = vpop.f32.mrf.mxu0
    %v480 = vadd.f32 0.0, %v479
    %v481 = vpop.f32.mrf.mxu0
    %482 = vmatprep.mubr.f32.mxu0 0.0
    %483 = vmatmul.mubr.f32.gmra.mxu0 %v400
    %v484 = vpop.f32.mrf.mxu0
    %v485 = vadd.f32 0.0, %v484
    %v486 = vpop.f32.mrf.mxu0
    %487 = vmatprep.mubr.f32.mxu0 0.0
    %488 = vmatmul.mubr.f32.gmra.mxu0 %v403
    %v489 = vpop.f32.mrf.mxu0
    %v490 = vadd.f32 0.0, %v489
    %v491 = vpop.f32.mrf.mxu0
    %492 = vdwg.mxu0
    %v493 = vadd.f32 %v298, %v475
    %v494 = vadd.f32 %v303, %v480
    %v495 = vadd.f32 %v308, %v485
    %v496 = vadd.f32 %v313, %v490
    %497 = vmatprep.subr.mxu0 0.0
    %498 = vmatpush1.msra.mxu0 %v33
    %499 = vmatprep.subr.mxu0 0.0
    %500 = vmatpush1.msra.mxu0 %v32
    %501 = vmatprep.subr.mxu0 0.0
    %502 = vmatpush1.msra.mxu0 %v31
    %503 = vmatprep.subr.mxu0 0.0
    %504 = vmatpush1.msra.mxu0 %v30
    %505 = vmatprep.subr.mxu0 0.0
    %506 = vmatpush1.msra.mxu0 %v29
    %507 = vmatprep.subr.mxu0 0.0
    %508 = vmatpush1.msra.mxu0 %v28
    %509 = vmatprep.subr.mxu0 0.0
    %510 = vmatpush1.msra.mxu0 %v27
    %511 = vmatprep.subr.mxu0 0.0
    %512 = vmatpush1.msra.mxu0 %v26
    %513 = vmatprep.subr.mxu0 0.0
    %514 = vmatpush1.msra.mxu0 %v25
    %515 = vmatprep.subr.mxu0 0.0
    %516 = vmatpush1.msra.mxu0 %v24
    %517 = vmatprep.subr.mxu0 0.0
    %518 = vmatpush1.msra.mxu0 %v23
    %519 = vmatprep.subr.mxu0 0.0
    %520 = vmatpush1.msra.mxu0 %v22
    %521 = vmatprep.subr.mxu0 0.0
    %522 = vmatpush1.msra.mxu0 %v21
    %523 = vmatprep.subr.mxu0 0.0
    %524 = vmatpush1.msra.mxu0 %v20
    %525 = vmatprep.subr.mxu0 0.0
    %526 = vmatpush1.msra.mxu0 %v19
    %527 = vmatprep.subr.mxu0 0.0
    %528 = vmatpush1.msra.mxu0 %v18
    %529 = vmatprep.subr.mxu0 0.0
    %530 = vmatpush2.msra.mxu0 0.0
    %531 = vmatprep.subr.mxu0 0.0
    %532 = vmatpush2.msra.mxu0 0.0
    %533 = vmatprep.subr.mxu0 0.0
    %534 = vmatpush2.msra.mxu0 0.0
    %535 = vmatprep.subr.mxu0 0.0
    %536 = vmatpush2.msra.mxu0 0.0
    %537 = vmatprep.subr.mxu0 0.0
    %538 = vmatpush2.msra.mxu0 0.0
    %539 = vmatprep.subr.mxu0 0.0
    %540 = vmatpush2.msra.mxu0 0.0
    %541 = vmatprep.subr.mxu0 0.0
    %542 = vmatpush2.msra.mxu0 0.0
    %543 = vmatprep.subr.mxu0 0.0
    %544 = vmatpush2.msra.mxu0 0.0
    %545 = vmatprep.subr.mxu0 0.0
    %546 = vmatpush2.msra.mxu0 0.0
    %547 = vmatprep.subr.mxu0 0.0
    %548 = vmatpush2.msra.mxu0 0.0
    %549 = vmatprep.subr.mxu0 0.0
    %550 = vmatpush2.msra.mxu0 0.0
    %551 = vmatprep.subr.mxu0 0.0
    %552 = vmatpush2.msra.mxu0 0.0
    %553 = vmatprep.subr.mxu0 0.0
    %554 = vmatpush2.msra.mxu0 0.0
    %555 = vmatprep.subr.mxu0 0.0
    %556 = vmatpush2.msra.mxu0 0.0
    %557 = vmatprep.subr.mxu0 0.0
    %558 = vmatpush2.msra.mxu0 0.0
    %559 = vmatprep.subr.mxu0 0.0
    %560 = vmatpush2.msra.mxu0 0.0
    %561 = vmatprep.mubr.f32.mxu0 0.0
    %562 = vmatmul.mubr.f32.gmra.mxu0 %v387
    %v563 = vpop.f32.mrf.mxu0
    %v564 = vadd.f32 0.0, %v563
    %v565 = vpop.f32.mrf.mxu0
    %566 = vdwg.mxu0
    %v567 = vmul.f32 %v564, 2.0
    %v568 = vsub.f32 %v567, %v106
    %s569 = scalar_lea.vmem %s2, 96
    %v570 = vld [vmem:[%s569] sm:$0xff]
    %v571 = vld [vmem:[%s569 + $0x8] sm:$0xff]
    %v572 = vld [vmem:[%s569 + $0x10] sm:$0xff]
    %v573 = vld [vmem:[%s569 + $0x18] sm:$0xff]
    %v575 = vsel %vm114, %v570, 0
    %v578 = vsel %vm114, %v571, 0
    %v581 = vsel %vm114, %v572, 0
    %v584 = vsel %vm114, %v573, 0
    %v587 = vsel %vm127, %v568, 0
    %589 = vmatprep.subr.mxu0 0.0
    %590 = vmatpush1.msra.mxu0 0.0
    %591 = vmatprep.subr.mxu0 0.0
    %592 = vmatpush1.msra.mxu0 0.0
    %593 = vmatprep.subr.mxu0 0.0
    %594 = vmatpush1.msra.mxu0 0.0
    %595 = vmatprep.subr.mxu0 0.0
    %596 = vmatpush1.msra.mxu0 0.0
    %597 = vmatprep.subr.mxu0 0.0
    %598 = vmatpush1.msra.mxu0 0.0
    %599 = vmatprep.subr.mxu0 0.0
    %600 = vmatpush1.msra.mxu0 0.0
    %601 = vmatprep.subr.mxu0 0.0
    %602 = vmatpush1.msra.mxu0 0.0
    %603 = vmatprep.subr.mxu0 0.0
    %604 = vmatpush1.msra.mxu0 0.0
    %605 = vmatprep.subr.mxu0 0.0
    %606 = vmatpush1.msra.mxu0 0.0
    %607 = vmatprep.subr.mxu0 0.0
    %608 = vmatpush1.msra.mxu0 0.0
    %609 = vmatprep.subr.mxu0 0.0
    %610 = vmatpush1.msra.mxu0 0.0
    %611 = vmatprep.subr.mxu0 0.0
    %612 = vmatpush1.msra.mxu0 0.0
    %613 = vmatprep.subr.mxu0 0.0
    %614 = vmatpush1.msra.mxu0 0.0
    %615 = vmatprep.subr.mxu0 0.0
    %616 = vmatpush1.msra.mxu0 0.0
    %617 = vmatprep.subr.mxu0 0.0
    %618 = vmatpush1.msra.mxu0 0.0
    %619 = vmatprep.subr.mxu0 0.0
    %620 = vmatpush1.msra.mxu0 %v587
    %621 = vmatprep.subr.mxu0 0.0
    %622 = vmatpush2.msra.mxu0 0.0
    %623 = vmatprep.subr.mxu0 0.0
    %624 = vmatpush2.msra.mxu0 0.0
    %625 = vmatprep.subr.mxu0 0.0
    %626 = vmatpush2.msra.mxu0 0.0
    %627 = vmatprep.subr.mxu0 0.0
    %628 = vmatpush2.msra.mxu0 0.0
    %629 = vmatprep.subr.mxu0 0.0
    %630 = vmatpush2.msra.mxu0 0.0
    %631 = vmatprep.subr.mxu0 0.0
    %632 = vmatpush2.msra.mxu0 0.0
    %633 = vmatprep.subr.mxu0 0.0
    %634 = vmatpush2.msra.mxu0 0.0
    %635 = vmatprep.subr.mxu0 0.0
    %636 = vmatpush2.msra.mxu0 0.0
    %637 = vmatprep.subr.mxu0 0.0
    %638 = vmatpush2.msra.mxu0 0.0
    %639 = vmatprep.subr.mxu0 0.0
    %640 = vmatpush2.msra.mxu0 0.0
    %641 = vmatprep.subr.mxu0 0.0
    %642 = vmatpush2.msra.mxu0 0.0
    %643 = vmatprep.subr.mxu0 0.0
    %644 = vmatpush2.msra.mxu0 0.0
    %645 = vmatprep.subr.mxu0 0.0
    %646 = vmatpush2.msra.mxu0 0.0
    %647 = vmatprep.subr.mxu0 0.0
    %648 = vmatpush2.msra.mxu0 0.0
    %649 = vmatprep.subr.mxu0 0.0
    %650 = vmatpush2.msra.mxu0 0.0
    %651 = vmatprep.subr.mxu0 0.0
    %652 = vmatpush2.msra.mxu0 0.0
    %653 = vmatprep.mubr.f32.mxu0 0.0
    %654 = vmatmul.mubr.f32.gmra.mxu0 %v575
    %v655 = vpop.f32.mrf.mxu0
    %v656 = vadd.f32 0.0, %v655
    %v657 = vpop.f32.mrf.mxu0
    %658 = vmatprep.mubr.f32.mxu0 0.0
    %659 = vmatmul.mubr.f32.gmra.mxu0 %v578
    %v660 = vpop.f32.mrf.mxu0
    %v661 = vadd.f32 0.0, %v660
    %v662 = vpop.f32.mrf.mxu0
    %663 = vmatprep.mubr.f32.mxu0 0.0
    %664 = vmatmul.mubr.f32.gmra.mxu0 %v581
    %v665 = vpop.f32.mrf.mxu0
    %v666 = vadd.f32 0.0, %v665
    %v667 = vpop.f32.mrf.mxu0
    %668 = vmatprep.mubr.f32.mxu0 0.0
    %669 = vmatmul.mubr.f32.gmra.mxu0 %v584
    %v670 = vpop.f32.mrf.mxu0
    %v671 = vadd.f32 0.0, %v670
    %v672 = vpop.f32.mrf.mxu0
    %673 = vdwg.mxu0
    %v674 = vadd.f32 %v493, %v656
    %v675 = vadd.f32 %v494, %v661
    %v676 = vadd.f32 %v495, %v666
    %v677 = vadd.f32 %v496, %v671
    %678 = vmatprep.subr.mxu0 0.0
    %679 = vmatpush1.msra.mxu0 %v33
    %680 = vmatprep.subr.mxu0 0.0
    %681 = vmatpush1.msra.mxu0 %v32
    %682 = vmatprep.subr.mxu0 0.0
    %683 = vmatpush1.msra.mxu0 %v31
    %684 = vmatprep.subr.mxu0 0.0
    %685 = vmatpush1.msra.mxu0 %v30
    %686 = vmatprep.subr.mxu0 0.0
    %687 = vmatpush1.msra.mxu0 %v29
    %688 = vmatprep.subr.mxu0 0.0
    %689 = vmatpush1.msra.mxu0 %v28
    %690 = vmatprep.subr.mxu0 0.0
    %691 = vmatpush1.msra.mxu0 %v27
    %692 = vmatprep.subr.mxu0 0.0
    %693 = vmatpush1.msra.mxu0 %v26
    %694 = vmatprep.subr.mxu0 0.0
    %695 = vmatpush1.msra.mxu0 %v25
    %696 = vmatprep.subr.mxu0 0.0
    %697 = vmatpush1.msra.mxu0 %v24
    %698 = vmatprep.subr.mxu0 0.0
    %699 = vmatpush1.msra.mxu0 %v23
    %700 = vmatprep.subr.mxu0 0.0
    %701 = vmatpush1.msra.mxu0 %v22
    %702 = vmatprep.subr.mxu0 0.0
    %703 = vmatpush1.msra.mxu0 %v21
    %704 = vmatprep.subr.mxu0 0.0
    %705 = vmatpush1.msra.mxu0 %v20
    %706 = vmatprep.subr.mxu0 0.0
    %707 = vmatpush1.msra.mxu0 %v19
    %708 = vmatprep.subr.mxu0 0.0
    %709 = vmatpush1.msra.mxu0 %v18
    %710 = vmatprep.subr.mxu0 0.0
    %711 = vmatpush2.msra.mxu0 0.0
    %712 = vmatprep.subr.mxu0 0.0
    %713 = vmatpush2.msra.mxu0 0.0
    %714 = vmatprep.subr.mxu0 0.0
    %715 = vmatpush2.msra.mxu0 0.0
    %716 = vmatprep.subr.mxu0 0.0
    %717 = vmatpush2.msra.mxu0 0.0
    %718 = vmatprep.subr.mxu0 0.0
    %719 = vmatpush2.msra.mxu0 0.0
    %720 = vmatprep.subr.mxu0 0.0
    %721 = vmatpush2.msra.mxu0 0.0
    %722 = vmatprep.subr.mxu0 0.0
    %723 = vmatpush2.msra.mxu0 0.0
    %724 = vmatprep.subr.mxu0 0.0
    %725 = vmatpush2.msra.mxu0 0.0
    %726 = vmatprep.subr.mxu0 0.0
    %727 = vmatpush2.msra.mxu0 0.0
    %728 = vmatprep.subr.mxu0 0.0
    %729 = vmatpush2.msra.mxu0 0.0
    %730 = vmatprep.subr.mxu0 0.0
    %731 = vmatpush2.msra.mxu0 0.0
    %732 = vmatprep.subr.mxu0 0.0
    %733 = vmatpush2.msra.mxu0 0.0
    %734 = vmatprep.subr.mxu0 0.0
    %735 = vmatpush2.msra.mxu0 0.0
    %736 = vmatprep.subr.mxu0 0.0
    %737 = vmatpush2.msra.mxu0 0.0
    %738 = vmatprep.subr.mxu0 0.0
    %739 = vmatpush2.msra.mxu0 0.0
    %740 = vmatprep.subr.mxu0 0.0
    %741 = vmatpush2.msra.mxu0 0.0
    %742 = vmatprep.mubr.f32.mxu0 0.0
    %743 = vmatmul.mubr.f32.gmra.mxu0 %v568
    %v744 = vpop.f32.mrf.mxu0
    %v745 = vadd.f32 0.0, %v744
    %v746 = vpop.f32.mrf.mxu0
    %747 = vdwg.mxu0
    %v748 = vmul.f32 %v745, 2.0
    %v749 = vsub.f32 %v748, %v387
    %s750 = scalar_lea.vmem %s2, 128
    %v751 = vld [vmem:[%s750] sm:$0xff]
    %v752 = vld [vmem:[%s750 + $0x8] sm:$0xff]
    %v753 = vld [vmem:[%s750 + $0x10] sm:$0xff]
    %v754 = vld [vmem:[%s750 + $0x18] sm:$0xff]
    %v756 = vsel %vm114, %v751, 0
    %v759 = vsel %vm114, %v752, 0
    %v762 = vsel %vm114, %v753, 0
    %v765 = vsel %vm114, %v754, 0
    %v768 = vsel %vm127, %v749, 0
    %770 = vmatprep.subr.mxu0 0.0
    %771 = vmatpush1.msra.mxu0 0.0
    %772 = vmatprep.subr.mxu0 0.0
    %773 = vmatpush1.msra.mxu0 0.0
    %774 = vmatprep.subr.mxu0 0.0
    %775 = vmatpush1.msra.mxu0 0.0
    %776 = vmatprep.subr.mxu0 0.0
    %777 = vmatpush1.msra.mxu0 0.0
    %778 = vmatprep.subr.mxu0 0.0
    %779 = vmatpush1.msra.mxu0 0.0
    %780 = vmatprep.subr.mxu0 0.0
    %781 = vmatpush1.msra.mxu0 0.0
    %782 = vmatprep.subr.mxu0 0.0
    %783 = vmatpush1.msra.mxu0 0.0
    %784 = vmatprep.subr.mxu0 0.0
    %785 = vmatpush1.msra.mxu0 0.0
    %786 = vmatprep.subr.mxu0 0.0
    %787 = vmatpush1.msra.mxu0 0.0
    %788 = vmatprep.subr.mxu0 0.0
    %789 = vmatpush1.msra.mxu0 0.0
    %790 = vmatprep.subr.mxu0 0.0
    %791 = vmatpush1.msra.mxu0 0.0
    %792 = vmatprep.subr.mxu0 0.0
    %793 = vmatpush1.msra.mxu0 0.0
    %794 = vmatprep.subr.mxu0 0.0
    %795 = vmatpush1.msra.mxu0 0.0
    %796 = vmatprep.subr.mxu0 0.0
    %797 = vmatpush1.msra.mxu0 0.0
    %798 = vmatprep.subr.mxu0 0.0
    %799 = vmatpush1.msra.mxu0 0.0
    %800 = vmatprep.subr.mxu0 0.0
    %801 = vmatpush1.msra.mxu0 %v768
    %802 = vmatprep.subr.mxu0 0.0
    %803 = vmatpush2.msra.mxu0 0.0
    %804 = vmatprep.subr.mxu0 0.0
    %805 = vmatpush2.msra.mxu0 0.0
    %806 = vmatprep.subr.mxu0 0.0
    %807 = vmatpush2.msra.mxu0 0.0
    %808 = vmatprep.subr.mxu0 0.0
    %809 = vmatpush2.msra.mxu0 0.0
    %810 = vmatprep.subr.mxu0 0.0
    %811 = vmatpush2.msra.mxu0 0.0
    %812 = vmatprep.subr.mxu0 0.0
    %813 = vmatpush2.msra.mxu0 0.0
    %814 = vmatprep.subr.mxu0 0.0
    %815 = vmatpush2.msra.mxu0 0.0
    %816 = vmatprep.subr.mxu0 0.0
    %817 = vmatpush2.msra.mxu0 0.0
    %818 = vmatprep.subr.mxu0 0.0
    %819 = vmatpush2.msra.mxu0 0.0
    %820 = vmatprep.subr.mxu0 0.0
    %821 = vmatpush2.msra.mxu0 0.0
    %822 = vmatprep.subr.mxu0 0.0
    %823 = vmatpush2.msra.mxu0 0.0
    %824 = vmatprep.subr.mxu0 0.0
    %825 = vmatpush2.msra.mxu0 0.0
    %826 = vmatprep.subr.mxu0 0.0
    %827 = vmatpush2.msra.mxu0 0.0
    %828 = vmatprep.subr.mxu0 0.0
    %829 = vmatpush2.msra.mxu0 0.0
    %830 = vmatprep.subr.mxu0 0.0
    %831 = vmatpush2.msra.mxu0 0.0
    %832 = vmatprep.subr.mxu0 0.0
    %833 = vmatpush2.msra.mxu0 0.0
    %834 = vmatprep.mubr.f32.mxu0 0.0
    %835 = vmatmul.mubr.f32.gmra.mxu0 %v756
    %v836 = vpop.f32.mrf.mxu0
    %v837 = vadd.f32 0.0, %v836
    %v838 = vpop.f32.mrf.mxu0
    %839 = vmatprep.mubr.f32.mxu0 0.0
    %840 = vmatmul.mubr.f32.gmra.mxu0 %v759
    %v841 = vpop.f32.mrf.mxu0
    %v842 = vadd.f32 0.0, %v841
    %v843 = vpop.f32.mrf.mxu0
    %844 = vmatprep.mubr.f32.mxu0 0.0
    %845 = vmatmul.mubr.f32.gmra.mxu0 %v762
    %v846 = vpop.f32.mrf.mxu0
    %v847 = vadd.f32 0.0, %v846
    %v848 = vpop.f32.mrf.mxu0
    %849 = vmatprep.mubr.f32.mxu0 0.0
    %850 = vmatmul.mubr.f32.gmra.mxu0 %v765
    %v851 = vpop.f32.mrf.mxu0
    %v852 = vadd.f32 0.0, %v851
    %v853 = vpop.f32.mrf.mxu0
    %854 = vdwg.mxu0
    %v855 = vadd.f32 %v674, %v837
    %v856 = vadd.f32 %v675, %v842
    %v857 = vadd.f32 %v676, %v847
    %v858 = vadd.f32 %v677, %v852
    %859 = vmatprep.subr.mxu0 0.0
    %860 = vmatpush1.msra.mxu0 %v33
    %861 = vmatprep.subr.mxu0 0.0
    %862 = vmatpush1.msra.mxu0 %v32
    %863 = vmatprep.subr.mxu0 0.0
    %864 = vmatpush1.msra.mxu0 %v31
    %865 = vmatprep.subr.mxu0 0.0
    %866 = vmatpush1.msra.mxu0 %v30
    %867 = vmatprep.subr.mxu0 0.0
    %868 = vmatpush1.msra.mxu0 %v29
    %869 = vmatprep.subr.mxu0 0.0
    %870 = vmatpush1.msra.mxu0 %v28
    %871 = vmatprep.subr.mxu0 0.0
    %872 = vmatpush1.msra.mxu0 %v27
    %873 = vmatprep.subr.mxu0 0.0
    %874 = vmatpush1.msra.mxu0 %v26
    %875 = vmatprep.subr.mxu0 0.0
    %876 = vmatpush1.msra.mxu0 %v25
    %877 = vmatprep.subr.mxu0 0.0
    %878 = vmatpush1.msra.mxu0 %v24
    %879 = vmatprep.subr.mxu0 0.0
    %880 = vmatpush1.msra.mxu0 %v23
    %881 = vmatprep.subr.mxu0 0.0
    %882 = vmatpush1.msra.mxu0 %v22
    %883 = vmatprep.subr.mxu0 0.0
    %884 = vmatpush1.msra.mxu0 %v21
    %885 = vmatprep.subr.mxu0 0.0
    %886 = vmatpush1.msra.mxu0 %v20
    %887 = vmatprep.subr.mxu0 0.0
    %888 = vmatpush1.msra.mxu0 %v19
    %889 = vmatprep.subr.mxu0 0.0
    %890 = vmatpush1.msra.mxu0 %v18
    %891 = vmatprep.subr.mxu0 0.0
    %892 = vmatpush2.msra.mxu0 0.0
    %893 = vmatprep.subr.mxu0 0.0
    %894 = vmatpush2.msra.mxu0 0.0
    %895 = vmatprep.subr.mxu0 0.0
    %896 = vmatpush2.msra.mxu0 0.0
    %897 = vmatprep.subr.mxu0 0.0
    %898 = vmatpush2.msra.mxu0 0.0
    %899 = vmatprep.subr.mxu0 0.0
    %900 = vmatpush2.msra.mxu0 0.0
    %901 = vmatprep.subr.mxu0 0.0
    %902 = vmatpush2.msra.mxu0 0.0
    %903 = vmatprep.subr.mxu0 0.0
    %904 = vmatpush2.msra.mxu0 0.0
    %905 = vmatprep.subr.mxu0 0.0
    %906 = vmatpush2.msra.mxu0 0.0
    %907 = vmatprep.subr.mxu0 0.0
    %908 = vmatpush2.msra.mxu0 0.0
    %909 = vmatprep.subr.mxu0 0.0
    %910 = vmatpush2.msra.mxu0 0.0
    %911 = vmatprep.subr.mxu0 0.0
    %912 = vmatpush2.msra.mxu0 0.0
    %913 = vmatprep.subr.mxu0 0.0
    %914 = vmatpush2.msra.mxu0 0.0
    %915 = vmatprep.subr.mxu0 0.0
    %916 = vmatpush2.msra.mxu0 0.0
    %917 = vmatprep.subr.mxu0 0.0
    %918 = vmatpush2.msra.mxu0 0.0
    %919 = vmatprep.subr.mxu0 0.0
    %920 = vmatpush2.msra.mxu0 0.0
    %921 = vmatprep.subr.mxu0 0.0
    %922 = vmatpush2.msra.mxu0 0.0
    %923 = vmatprep.mubr.f32.mxu0 0.0
    %924 = vmatmul.mubr.f32.gmra.mxu0 %v749
    %v925 = vpop.f32.mrf.mxu0
    %v926 = vadd.f32 0.0, %v925
    %v927 = vpop.f32.mrf.mxu0
    %928 = vdwg.mxu0
    %v929 = vmul.f32 %v926, 2.0
    %v930 = vsub.f32 %v929, %v568
    %s931 = scalar_lea.vmem %s2, 160
    %v932 = vld [vmem:[%s931] sm:$0xff]
    %v933 = vld [vmem:[%s931 + $0x8] sm:$0xff]
    %v934 = vld [vmem:[%s931 + $0x10] sm:$0xff]
    %v935 = vld [vmem:[%s931 + $0x18] sm:$0xff]
    %v937 = vsel %vm114, %v932, 0
    %v940 = vsel %vm114, %v933, 0
    %v943 = vsel %vm114, %v934, 0
    %v946 = vsel %vm114, %v935, 0
    %v949 = vsel %vm127, %v930, 0
    %951 = vmatprep.subr.mxu0 0.0
    %952 = vmatpush1.msra.mxu0 0.0
    %953 = vmatprep.subr.mxu0 0.0
    %954 = vmatpush1.msra.mxu0 0.0
    %955 = vmatprep.subr.mxu0 0.0
    %956 = vmatpush1.msra.mxu0 0.0
    %957 = vmatprep.subr.mxu0 0.0
    %958 = vmatpush1.msra.mxu0 0.0
    %959 = vmatprep.subr.mxu0 0.0
    %960 = vmatpush1.msra.mxu0 0.0
    %961 = vmatprep.subr.mxu0 0.0
    %962 = vmatpush1.msra.mxu0 0.0
    %963 = vmatprep.subr.mxu0 0.0
    %964 = vmatpush1.msra.mxu0 0.0
    %965 = vmatprep.subr.mxu0 0.0
    %966 = vmatpush1.msra.mxu0 0.0
    %967 = vmatprep.subr.mxu0 0.0
    %968 = vmatpush1.msra.mxu0 0.0
    %969 = vmatprep.subr.mxu0 0.0
    %970 = vmatpush1.msra.mxu0 0.0
    %971 = vmatprep.subr.mxu0 0.0
    %972 = vmatpush1.msra.mxu0 0.0
    %973 = vmatprep.subr.mxu0 0.0
    %974 = vmatpush1.msra.mxu0 0.0
    %975 = vmatprep.subr.mxu0 0.0
    %976 = vmatpush1.msra.mxu0 0.0
    %977 = vmatprep.subr.mxu0 0.0
    %978 = vmatpush1.msra.mxu0 0.0
    %979 = vmatprep.subr.mxu0 0.0
    %980 = vmatpush1.msra.mxu0 0.0
    %981 = vmatprep.subr.mxu0 0.0
    %982 = vmatpush1.msra.mxu0 %v949
    %983 = vmatprep.subr.mxu0 0.0
    %984 = vmatpush2.msra.mxu0 0.0
    %985 = vmatprep.subr.mxu0 0.0
    %986 = vmatpush2.msra.mxu0 0.0
    %987 = vmatprep.subr.mxu0 0.0
    %988 = vmatpush2.msra.mxu0 0.0
    %989 = vmatprep.subr.mxu0 0.0
    %990 = vmatpush2.msra.mxu0 0.0
    %991 = vmatprep.subr.mxu0 0.0
    %992 = vmatpush2.msra.mxu0 0.0
    %993 = vmatprep.subr.mxu0 0.0
    %994 = vmatpush2.msra.mxu0 0.0
    %995 = vmatprep.subr.mxu0 0.0
    %996 = vmatpush2.msra.mxu0 0.0
    %997 = vmatprep.subr.mxu0 0.0
    %998 = vmatpush2.msra.mxu0 0.0
    %999 = vmatprep.subr.mxu0 0.0
    %1000 = vmatpush2.msra.mxu0 0.0
    %1001 = vmatprep.subr.mxu0 0.0
    %1002 = vmatpush2.msra.mxu0 0.0
    %1003 = vmatprep.subr.mxu0 0.0
    %1004 = vmatpush2.msra.mxu0 0.0
    %1005 = vmatprep.subr.mxu0 0.0
    %1006 = vmatpush2.msra.mxu0 0.0
    %1007 = vmatprep.subr.mxu0 0.0
    %1008 = vmatpush2.msra.mxu0 0.0
    %1009 = vmatprep.subr.mxu0 0.0
    %1010 = vmatpush2.msra.mxu0 0.0
    %1011 = vmatprep.subr.mxu0 0.0
    %1012 = vmatpush2.msra.mxu0 0.0
    %1013 = vmatprep.subr.mxu0 0.0
    %1014 = vmatpush2.msra.mxu0 0.0
    %1015 = vmatprep.mubr.f32.mxu0 0.0
    %1016 = vmatmul.mubr.f32.gmra.mxu0 %v937
    %v1017 = vpop.f32.mrf.mxu0
    %v1018 = vadd.f32 0.0, %v1017
    %v1019 = vpop.f32.mrf.mxu0
    %1020 = vmatprep.mubr.f32.mxu0 0.0
    %1021 = vmatmul.mubr.f32.gmra.mxu0 %v940
    %v1022 = vpop.f32.mrf.mxu0
    %v1023 = vadd.f32 0.0, %v1022
    %v1024 = vpop.f32.mrf.mxu0
    %1025 = vmatprep.mubr.f32.mxu0 0.0
    %1026 = vmatmul.mubr.f32.gmra.mxu0 %v943
    %v1027 = vpop.f32.mrf.mxu0
    %v1028 = vadd.f32 0.0, %v1027
    %v1029 = vpop.f32.mrf.mxu0
    %1030 = vmatprep.mubr.f32.mxu0 0.0
    %1031 = vmatmul.mubr.f32.gmra.mxu0 %v946
    %v1032 = vpop.f32.mrf.mxu0
    %v1033 = vadd.f32 0.0, %v1032
    %v1034 = vpop.f32.mrf.mxu0
    %1035 = vdwg.mxu0
    %v1036 = vadd.f32 %v855, %v1018
    %v1037 = vadd.f32 %v856, %v1023
    %v1038 = vadd.f32 %v857, %v1028
    %v1039 = vadd.f32 %v858, %v1033
    %1040 = vmatprep.subr.mxu0 0.0
    %1041 = vmatpush1.msra.mxu0 %v33
    %1042 = vmatprep.subr.mxu0 0.0
    %1043 = vmatpush1.msra.mxu0 %v32
    %1044 = vmatprep.subr.mxu0 0.0
    %1045 = vmatpush1.msra.mxu0 %v31
    %1046 = vmatprep.subr.mxu0 0.0
    %1047 = vmatpush1.msra.mxu0 %v30
    %1048 = vmatprep.subr.mxu0 0.0
    %1049 = vmatpush1.msra.mxu0 %v29
    %1050 = vmatprep.subr.mxu0 0.0
    %1051 = vmatpush1.msra.mxu0 %v28
    %1052 = vmatprep.subr.mxu0 0.0
    %1053 = vmatpush1.msra.mxu0 %v27
    %1054 = vmatprep.subr.mxu0 0.0
    %1055 = vmatpush1.msra.mxu0 %v26
    %1056 = vmatprep.subr.mxu0 0.0
    %1057 = vmatpush1.msra.mxu0 %v25
    %1058 = vmatprep.subr.mxu0 0.0
    %1059 = vmatpush1.msra.mxu0 %v24
    %1060 = vmatprep.subr.mxu0 0.0
    %1061 = vmatpush1.msra.mxu0 %v23
    %1062 = vmatprep.subr.mxu0 0.0
    %1063 = vmatpush1.msra.mxu0 %v22
    %1064 = vmatprep.subr.mxu0 0.0
    %1065 = vmatpush1.msra.mxu0 %v21
    %1066 = vmatprep.subr.mxu0 0.0
    %1067 = vmatpush1.msra.mxu0 %v20
    %1068 = vmatprep.subr.mxu0 0.0
    %1069 = vmatpush1.msra.mxu0 %v19
    %1070 = vmatprep.subr.mxu0 0.0
    %1071 = vmatpush1.msra.mxu0 %v18
    %1072 = vmatprep.subr.mxu0 0.0
    %1073 = vmatpush2.msra.mxu0 0.0
    %1074 = vmatprep.subr.mxu0 0.0
    %1075 = vmatpush2.msra.mxu0 0.0
    %1076 = vmatprep.subr.mxu0 0.0
    %1077 = vmatpush2.msra.mxu0 0.0
    %1078 = vmatprep.subr.mxu0 0.0
    %1079 = vmatpush2.msra.mxu0 0.0
    %1080 = vmatprep.subr.mxu0 0.0
    %1081 = vmatpush2.msra.mxu0 0.0
    %1082 = vmatprep.subr.mxu0 0.0
    %1083 = vmatpush2.msra.mxu0 0.0
    %1084 = vmatprep.subr.mxu0 0.0
    %1085 = vmatpush2.msra.mxu0 0.0
    %1086 = vmatprep.subr.mxu0 0.0
    %1087 = vmatpush2.msra.mxu0 0.0
    %1088 = vmatprep.subr.mxu0 0.0
    %1089 = vmatpush2.msra.mxu0 0.0
    %1090 = vmatprep.subr.mxu0 0.0
    %1091 = vmatpush2.msra.mxu0 0.0
    %1092 = vmatprep.subr.mxu0 0.0
    %1093 = vmatpush2.msra.mxu0 0.0
    %1094 = vmatprep.subr.mxu0 0.0
    %1095 = vmatpush2.msra.mxu0 0.0
    %1096 = vmatprep.subr.mxu0 0.0
    %1097 = vmatpush2.msra.mxu0 0.0
    %1098 = vmatprep.subr.mxu0 0.0
    %1099 = vmatpush2.msra.mxu0 0.0
    %1100 = vmatprep.subr.mxu0 0.0
    %1101 = vmatpush2.msra.mxu0 0.0
    %1102 = vmatprep.subr.mxu0 0.0
    %1103 = vmatpush2.msra.mxu0 0.0
    %1104 = vmatprep.mubr.f32.mxu0 0.0
    %1105 = vmatmul.mubr.f32.gmra.mxu0 %v930
    %v1106 = vpop.f32.mrf.mxu0
    %v1107 = vadd.f32 0.0, %v1106
    %v1108 = vpop.f32.mrf.mxu0
    %1109 = vdwg.mxu0
    %v1110 = vmul.f32 %v1107, 2.0
    %v1111 = vsub.f32 %v1110, %v749
    %s1112 = scalar_lea.vmem %s2, 192
    %v1113 = vld [vmem:[%s1112] sm:$0xff]
    %v1114 = vld [vmem:[%s1112 + $0x8] sm:$0xff]
    %v1115 = vld [vmem:[%s1112 + $0x10] sm:$0xff]
    %v1116 = vld [vmem:[%s1112 + $0x18] sm:$0xff]
    %v1118 = vsel %vm114, %v1113, 0
    %v1121 = vsel %vm114, %v1114, 0
    %v1124 = vsel %vm114, %v1115, 0
    %v1127 = vsel %vm114, %v1116, 0
    %v1130 = vsel %vm127, %v1111, 0
    %1132 = vmatprep.subr.mxu0 0.0
    %1133 = vmatpush1.msra.mxu0 0.0
    %1134 = vmatprep.subr.mxu0 0.0
    %1135 = vmatpush1.msra.mxu0 0.0
    %1136 = vmatprep.subr.mxu0 0.0
    %1137 = vmatpush1.msra.mxu0 0.0
    %1138 = vmatprep.subr.mxu0 0.0
    %1139 = vmatpush1.msra.mxu0 0.0
    %1140 = vmatprep.subr.mxu0 0.0
    %1141 = vmatpush1.msra.mxu0 0.0
    %1142 = vmatprep.subr.mxu0 0.0
    %1143 = vmatpush1.msra.mxu0 0.0
    %1144 = vmatprep.subr.mxu0 0.0
    %1145 = vmatpush1.msra.mxu0 0.0
    %1146 = vmatprep.subr.mxu0 0.0
    %1147 = vmatpush1.msra.mxu0 0.0
    %1148 = vmatprep.subr.mxu0 0.0
    %1149 = vmatpush1.msra.mxu0 0.0
    %1150 = vmatprep.subr.mxu0 0.0
    %1151 = vmatpush1.msra.mxu0 0.0
    %1152 = vmatprep.subr.mxu0 0.0
    %1153 = vmatpush1.msra.mxu0 0.0
    %1154 = vmatprep.subr.mxu0 0.0
    %1155 = vmatpush1.msra.mxu0 0.0
    %1156 = vmatprep.subr.mxu0 0.0
    %1157 = vmatpush1.msra.mxu0 0.0
    %1158 = vmatprep.subr.mxu0 0.0
    %1159 = vmatpush1.msra.mxu0 0.0
    %1160 = vmatprep.subr.mxu0 0.0
    %1161 = vmatpush1.msra.mxu0 0.0
    %1162 = vmatprep.subr.mxu0 0.0
    %1163 = vmatpush1.msra.mxu0 %v1130
    %1164 = vmatprep.subr.mxu0 0.0
    %1165 = vmatpush2.msra.mxu0 0.0
    %1166 = vmatprep.subr.mxu0 0.0
    %1167 = vmatpush2.msra.mxu0 0.0
    %1168 = vmatprep.subr.mxu0 0.0
    %1169 = vmatpush2.msra.mxu0 0.0
    %1170 = vmatprep.subr.mxu0 0.0
    %1171 = vmatpush2.msra.mxu0 0.0
    %1172 = vmatprep.subr.mxu0 0.0
    %1173 = vmatpush2.msra.mxu0 0.0
    %1174 = vmatprep.subr.mxu0 0.0
    %1175 = vmatpush2.msra.mxu0 0.0
    %1176 = vmatprep.subr.mxu0 0.0
    %1177 = vmatpush2.msra.mxu0 0.0
    %1178 = vmatprep.subr.mxu0 0.0
    %1179 = vmatpush2.msra.mxu0 0.0
    %1180 = vmatprep.subr.mxu0 0.0
    %1181 = vmatpush2.msra.mxu0 0.0
    %1182 = vmatprep.subr.mxu0 0.0
    %1183 = vmatpush2.msra.mxu0 0.0
    %1184 = vmatprep.subr.mxu0 0.0
    %1185 = vmatpush2.msra.mxu0 0.0
    %1186 = vmatprep.subr.mxu0 0.0
    %1187 = vmatpush2.msra.mxu0 0.0
    %1188 = vmatprep.subr.mxu0 0.0
    %1189 = vmatpush2.msra.mxu0 0.0
    %1190 = vmatprep.subr.mxu0 0.0
    %1191 = vmatpush2.msra.mxu0 0.0
    %1192 = vmatprep.subr.mxu0 0.0
    %1193 = vmatpush2.msra.mxu0 0.0
    %1194 = vmatprep.subr.mxu0 0.0
    %1195 = vmatpush2.msra.mxu0 0.0
    %1196 = vmatprep.mubr.f32.mxu0 0.0
    %1197 = vmatmul.mubr.f32.gmra.mxu0 %v1118
    %v1198 = vpop.f32.mrf.mxu0
    %v1199 = vadd.f32 0.0, %v1198
    %v1200 = vpop.f32.mrf.mxu0
    %1201 = vmatprep.mubr.f32.mxu0 0.0
    %1202 = vmatmul.mubr.f32.gmra.mxu0 %v1121
    %v1203 = vpop.f32.mrf.mxu0
    %v1204 = vadd.f32 0.0, %v1203
    %v1205 = vpop.f32.mrf.mxu0
    %1206 = vmatprep.mubr.f32.mxu0 0.0
    %1207 = vmatmul.mubr.f32.gmra.mxu0 %v1124
    %v1208 = vpop.f32.mrf.mxu0
    %v1209 = vadd.f32 0.0, %v1208
    %v1210 = vpop.f32.mrf.mxu0
    %1211 = vmatprep.mubr.f32.mxu0 0.0
    %1212 = vmatmul.mubr.f32.gmra.mxu0 %v1127
    %v1213 = vpop.f32.mrf.mxu0
    %v1214 = vadd.f32 0.0, %v1213
    %v1215 = vpop.f32.mrf.mxu0
    %1216 = vdwg.mxu0
    %v1217 = vadd.f32 %v1036, %v1199
    %v1218 = vadd.f32 %v1037, %v1204
    %v1219 = vadd.f32 %v1038, %v1209
    %v1220 = vadd.f32 %v1039, %v1214
    %1221 = vmatprep.subr.mxu0 0.0
    %1222 = vmatpush1.msra.mxu0 %v33
    %1223 = vmatprep.subr.mxu0 0.0
    %1224 = vmatpush1.msra.mxu0 %v32
    %1225 = vmatprep.subr.mxu0 0.0
    %1226 = vmatpush1.msra.mxu0 %v31
    %1227 = vmatprep.subr.mxu0 0.0
    %1228 = vmatpush1.msra.mxu0 %v30
    %1229 = vmatprep.subr.mxu0 0.0
    %1230 = vmatpush1.msra.mxu0 %v29
    %1231 = vmatprep.subr.mxu0 0.0
    %1232 = vmatpush1.msra.mxu0 %v28
    %1233 = vmatprep.subr.mxu0 0.0
    %1234 = vmatpush1.msra.mxu0 %v27
    %1235 = vmatprep.subr.mxu0 0.0
    %1236 = vmatpush1.msra.mxu0 %v26
    %1237 = vmatprep.subr.mxu0 0.0
    %1238 = vmatpush1.msra.mxu0 %v25
    %1239 = vmatprep.subr.mxu0 0.0
    %1240 = vmatpush1.msra.mxu0 %v24
    %1241 = vmatprep.subr.mxu0 0.0
    %1242 = vmatpush1.msra.mxu0 %v23
    %1243 = vmatprep.subr.mxu0 0.0
    %1244 = vmatpush1.msra.mxu0 %v22
    %1245 = vmatprep.subr.mxu0 0.0
    %1246 = vmatpush1.msra.mxu0 %v21
    %1247 = vmatprep.subr.mxu0 0.0
    %1248 = vmatpush1.msra.mxu0 %v20
    %1249 = vmatprep.subr.mxu0 0.0
    %1250 = vmatpush1.msra.mxu0 %v19
    %1251 = vmatprep.subr.mxu0 0.0
    %1252 = vmatpush1.msra.mxu0 %v18
    %1253 = vmatprep.subr.mxu0 0.0
    %1254 = vmatpush2.msra.mxu0 0.0
    %1255 = vmatprep.subr.mxu0 0.0
    %1256 = vmatpush2.msra.mxu0 0.0
    %1257 = vmatprep.subr.mxu0 0.0
    %1258 = vmatpush2.msra.mxu0 0.0
    %1259 = vmatprep.subr.mxu0 0.0
    %1260 = vmatpush2.msra.mxu0 0.0
    %1261 = vmatprep.subr.mxu0 0.0
    %1262 = vmatpush2.msra.mxu0 0.0
    %1263 = vmatprep.subr.mxu0 0.0
    %1264 = vmatpush2.msra.mxu0 0.0
    %1265 = vmatprep.subr.mxu0 0.0
    %1266 = vmatpush2.msra.mxu0 0.0
    %1267 = vmatprep.subr.mxu0 0.0
    %1268 = vmatpush2.msra.mxu0 0.0
    %1269 = vmatprep.subr.mxu0 0.0
    %1270 = vmatpush2.msra.mxu0 0.0
    %1271 = vmatprep.subr.mxu0 0.0
    %1272 = vmatpush2.msra.mxu0 0.0
    %1273 = vmatprep.subr.mxu0 0.0
    %1274 = vmatpush2.msra.mxu0 0.0
    %1275 = vmatprep.subr.mxu0 0.0
    %1276 = vmatpush2.msra.mxu0 0.0
    %1277 = vmatprep.subr.mxu0 0.0
    %1278 = vmatpush2.msra.mxu0 0.0
    %1279 = vmatprep.subr.mxu0 0.0
    %1280 = vmatpush2.msra.mxu0 0.0
    %1281 = vmatprep.subr.mxu0 0.0
    %1282 = vmatpush2.msra.mxu0 0.0
    %1283 = vmatprep.subr.mxu0 0.0
    %1284 = vmatpush2.msra.mxu0 0.0
    %1285 = vmatprep.mubr.f32.mxu0 0.0
    %1286 = vmatmul.mubr.f32.gmra.mxu0 %v1111
    %v1287 = vpop.f32.mrf.mxu0
    %v1288 = vadd.f32 0.0, %v1287
    %v1289 = vpop.f32.mrf.mxu0
    %1290 = vdwg.mxu0
    %v1291 = vmul.f32 %v1288, 2.0
    %v1292 = vsub.f32 %v1291, %v930
    %s1293 = scalar_lea.vmem %s2, 224
    %v1294 = vld [vmem:[%s1293] sm:$0xff]
    %v1295 = vld [vmem:[%s1293 + $0x8] sm:$0xff]
    %v1296 = vld [vmem:[%s1293 + $0x10] sm:$0xff]
    %v1297 = vld [vmem:[%s1293 + $0x18] sm:$0xff]
    %v1299 = vsel %vm114, %v1294, 0
    %v1302 = vsel %vm114, %v1295, 0
    %v1305 = vsel %vm114, %v1296, 0
    %v1308 = vsel %vm114, %v1297, 0
    %v1311 = vsel %vm127, %v1292, 0
    %1313 = vmatprep.subr.mxu0 0.0
    %1314 = vmatpush1.msra.mxu0 0.0
    %1315 = vmatprep.subr.mxu0 0.0
    %1316 = vmatpush1.msra.mxu0 0.0
    %1317 = vmatprep.subr.mxu0 0.0
    %1318 = vmatpush1.msra.mxu0 0.0
    %1319 = vmatprep.subr.mxu0 0.0
    %1320 = vmatpush1.msra.mxu0 0.0
    %1321 = vmatprep.subr.mxu0 0.0
    %1322 = vmatpush1.msra.mxu0 0.0
    %1323 = vmatprep.subr.mxu0 0.0
    %1324 = vmatpush1.msra.mxu0 0.0
    %1325 = vmatprep.subr.mxu0 0.0
    %1326 = vmatpush1.msra.mxu0 0.0
    %1327 = vmatprep.subr.mxu0 0.0
    %1328 = vmatpush1.msra.mxu0 0.0
    %1329 = vmatprep.subr.mxu0 0.0
    %1330 = vmatpush1.msra.mxu0 0.0
    %1331 = vmatprep.subr.mxu0 0.0
    %1332 = vmatpush1.msra.mxu0 0.0
    %1333 = vmatprep.subr.mxu0 0.0
    %1334 = vmatpush1.msra.mxu0 0.0
    %1335 = vmatprep.subr.mxu0 0.0
    %1336 = vmatpush1.msra.mxu0 0.0
    %1337 = vmatprep.subr.mxu0 0.0
    %1338 = vmatpush1.msra.mxu0 0.0
    %1339 = vmatprep.subr.mxu0 0.0
    %1340 = vmatpush1.msra.mxu0 0.0
    %1341 = vmatprep.subr.mxu0 0.0
    %1342 = vmatpush1.msra.mxu0 0.0
    %1343 = vmatprep.subr.mxu0 0.0
    %1344 = vmatpush1.msra.mxu0 %v1311
    %1345 = vmatprep.subr.mxu0 0.0
    %1346 = vmatpush2.msra.mxu0 0.0
    %1347 = vmatprep.subr.mxu0 0.0
    %1348 = vmatpush2.msra.mxu0 0.0
    %1349 = vmatprep.subr.mxu0 0.0
    %1350 = vmatpush2.msra.mxu0 0.0
    %1351 = vmatprep.subr.mxu0 0.0
    %1352 = vmatpush2.msra.mxu0 0.0
    %1353 = vmatprep.subr.mxu0 0.0
    %1354 = vmatpush2.msra.mxu0 0.0
    %1355 = vmatprep.subr.mxu0 0.0
    %1356 = vmatpush2.msra.mxu0 0.0
    %1357 = vmatprep.subr.mxu0 0.0
    %1358 = vmatpush2.msra.mxu0 0.0
    %1359 = vmatprep.subr.mxu0 0.0
    %1360 = vmatpush2.msra.mxu0 0.0
    %1361 = vmatprep.subr.mxu0 0.0
    %1362 = vmatpush2.msra.mxu0 0.0
    %1363 = vmatprep.subr.mxu0 0.0
    %1364 = vmatpush2.msra.mxu0 0.0
    %1365 = vmatprep.subr.mxu0 0.0
    %1366 = vmatpush2.msra.mxu0 0.0
    %1367 = vmatprep.subr.mxu0 0.0
    %1368 = vmatpush2.msra.mxu0 0.0
    %1369 = vmatprep.subr.mxu0 0.0
    %1370 = vmatpush2.msra.mxu0 0.0
    %1371 = vmatprep.subr.mxu0 0.0
    %1372 = vmatpush2.msra.mxu0 0.0
    %1373 = vmatprep.subr.mxu0 0.0
    %1374 = vmatpush2.msra.mxu0 0.0
    %1375 = vmatprep.subr.mxu0 0.0
    %1376 = vmatpush2.msra.mxu0 0.0
    %1377 = vmatprep.mubr.f32.mxu0 0.0
    %1378 = vmatmul.mubr.f32.gmra.mxu0 %v1299
    %v1379 = vpop.f32.mrf.mxu0
    %v1380 = vadd.f32 0.0, %v1379
    %v1381 = vpop.f32.mrf.mxu0
    %1382 = vmatprep.mubr.f32.mxu0 0.0
    %1383 = vmatmul.mubr.f32.gmra.mxu0 %v1302
    %v1384 = vpop.f32.mrf.mxu0
    %v1385 = vadd.f32 0.0, %v1384
    %v1386 = vpop.f32.mrf.mxu0
    %1387 = vmatprep.mubr.f32.mxu0 0.0
    %1388 = vmatmul.mubr.f32.gmra.mxu0 %v1305
    %v1389 = vpop.f32.mrf.mxu0
    %v1390 = vadd.f32 0.0, %v1389
    %v1391 = vpop.f32.mrf.mxu0
    %1392 = vmatprep.mubr.f32.mxu0 0.0
    %1393 = vmatmul.mubr.f32.gmra.mxu0 %v1308
    %v1394 = vpop.f32.mrf.mxu0
    %v1395 = vadd.f32 0.0, %v1394
    %v1396 = vpop.f32.mrf.mxu0
    %1397 = vdwg.mxu0
    %v1398 = vadd.f32 %v1217, %v1380
    %v1399 = vadd.f32 %v1218, %v1385
    %v1400 = vadd.f32 %v1219, %v1390
    %v1401 = vadd.f32 %v1220, %v1395
    %v1402 = vld [vmem:[%s3] sm:$0xff]
    %v1403 = vld [vmem:[%s3 + $0x8] sm:$0xff]
    %v1404 = vld [vmem:[%s3 + $0x10] sm:$0xff]
    %v1405 = vld [vmem:[%s3 + $0x18] sm:$0xff]
    %1407 = vset.pattern.permute.xlu0 0
    %1408 = vperm.xlu0 %1407, %v1402
    %v1409 = vpop.permute.xlu0 %1408
    %1412 = vset.pattern.permute.xlu0 0
    %1413 = vperm.xlu0 %1412, %v1403
    %v1414 = vpop.permute.xlu0 %1413
    %1417 = vset.pattern.permute.xlu0 0
    %1418 = vperm.xlu0 %1417, %v1404
    %v1419 = vpop.permute.xlu0 %1418
    %1422 = vset.pattern.permute.xlu0 0
    %1423 = vperm.xlu0 %1422, %v1405
    %v1424 = vpop.permute.xlu0 %1423
    %v1426 = vadd.f32 %v1398, %v1409
    %v1427 = vadd.f32 %v1399, %v1414
    %v1428 = vadd.f32 %v1400, %v1419
    %v1429 = vadd.f32 %v1401, %v1424
    %v1430 = vmax.f32 %v1426, 0.0
    %v1431 = vmax.f32 %v1427, 0.0
    %v1432 = vmax.f32 %v1428, 0.0
    %v1433 = vmax.f32 %v1429, 0.0
    %1434 = vst [vmem:[#allocation2] sm:$0xff] %v1430
    %1435 = vst [vmem:[#allocation2 + $0x8] sm:$0xff] %v1431
    %1436 = vst [vmem:[#allocation2 + $0x10] sm:$0xff] %v1432
    %1437 = vst [vmem:[#allocation2 + $0x18] sm:$0xff] %v1433
    // Predicated region
    $region18: #{tpu_custom_call.1} parent=1 // pred_check
      _
    $region19: #{tpu_custom_call.1} parent=1 // pred_check_branch
      %1439 = sbr.rel (0) target = $region21
    $region20: #{tpu_custom_call.1} parent=1 // pred_region
      %s1441 = ssub.s32 512, 512
      %1442 = vsyncadd [#allocation3], %s1441
      %s1443 = sshll.u32 [#allocation2], 4
      %s1444 = int_to_ptr.vmem [resolvable:$true] %s1443
      %1449 = dma.vmem_to_hbm [thread:$0]  %s1444, 512, %s4, [#allocation3], 128, 128, 8
    $region21: #{tpu_custom_call.1} parent=1 // pred_fallthru
      _
    // Predicated region
    $region22: #{tpu_custom_call.1} parent=1 // pred_check
      _
    $region23: #{tpu_custom_call.1} parent=1 // pred_check_branch
      %1451 = sbr.rel (0) target = $region25
    $region24: #{tpu_custom_call.1} parent=1 // pred_region
      %1452 = dma.done [#allocation3], 512
    $region25: #{tpu_custom_call.1} parent=1 // pred_fallthru
      _
    %1453 = vsyncpa [#allocation3], 1

</llo_original>
